<compile_context>
chip_gen: v6e
topology: v6e:2x2x1
jax: 0.10.0
libtpu: 0.0.40
codegen_flags: <defaults>
</compile_context>

<pallas_src>
import functools

import jax
import jax.numpy as jnp
from jax import lax
from jax.experimental import pallas as pl
from jax.experimental.pallas import tpu as pltpu


def _basic_block_kernel(x_ref, m_ref, w1_ref, b1_ref, w2_ref, b2_ref, o_ref,
                        col_ref, *, W, compute_dtype):
    # x_ref:   (NB, C, H*W)   image group, channels-as-rows, pixels-as-lanes
    # m_ref:   (9, H*W)       {0,1} border masks per 3x3 tap
    # w*_ref:  (C, 9*C)       BN-scale-folded weights, columns ordered (kh,kw,cin)
    # b*_ref:  (C, 1)         folded BN bias (per output channel)
    # o_ref:   (NB, C, H*W)   output (lane-dense last dim, matches NCHW layout)
    # col_ref: (9*C, H*W)     im2col scratch (single big-K matmul per conv)
    NB, C, HW = x_ref.shape

    # Loaded / broadcast once per grid step, reused for every image in the group.
    masks = m_ref[...]                                   # (9, HW)
    tap_masks = [masks[t:t + 1, :] for t in range(9)]    # hoisted row slices
    w1 = w1_ref[...]
    w2 = w2_ref[...]
    # Hoisted bias broadcasts (JAX does not CSE broadcast_in_dim).
    b1 = jnp.broadcast_to(b1_ref[...], (C, HW))
    b2 = jnp.broadcast_to(b2_ref[...], (C, HW))

    def conv3x3_bn(w, b, img):
        # img: (C, HW) -> (C, HW) float32.  BN scale already folded into w.
        img_c = img.astype(compute_dtype)
        for dh in (-1, 0, 1):
            for dw in (-1, 0, 1):
                t = (dh + 1) * 3 + (dw + 1)           # == kh*3 + kw
                s = dh * W + dw
                # tap[p] must equal img[p + s] (zero where the 3x3 window falls
                # outside the image): roll by -s (mod HW) along the lane dim,
                # then zero the wrapped border lanes with the precomputed mask.
                tap = img_c if s == 0 else pltpu.roll(img_c, (-s) % HW, axis=1)
                if t != 4:                            # center tap needs no mask
                    tap = tap * tap_masks[t]
                col_ref[t * C:(t + 1) * C, :] = tap
        out = jnp.dot(w, col_ref[...], preferred_element_type=jnp.float32)
        return out + b                                 # per-channel bias (f32)

    for n in range(NB):   # static unroll over the image group (NB <= 8)
        x_n = x_ref[n]                                              # (C, HW)
        h1 = jnp.maximum(conv3x3_bn(w1, b1, x_n), 0.0)              # conv1+bn1+relu
        h2 = conv3x3_bn(w2, b2, h1) + x_n.astype(jnp.float32)       # conv2+bn2+res
        o_ref[n] = jnp.maximum(h2, 0.0).astype(o_ref.dtype)         # final relu


def _fold_bn(gamma, beta, mean, var, eps):
    scale = gamma / jnp.sqrt(var + eps)
    bias = beta - mean * scale
    return scale, bias


def _prep_conv_bn(w_oihw, bn, eps, compute_dtype):
    """Fold BN scale into the conv weight and reshape to (Cout, 9*Cin)."""
    scale, bias = _fold_bn(*bn, eps=eps)
    w = w_oihw * scale[:, None, None, None]                 # (O, I, 3, 3)
    cout, cin = w.shape[0], w.shape[1]
    # Column ordering (kh, kw, cin) must match the im2col row ordering.
    w_t = jnp.transpose(w, (0, 2, 3, 1)).reshape(cout, 9 * cin)
    return w_t.astype(compute_dtype), bias.reshape(cout, 1).astype(jnp.float32)


def _make_tap_masks(H, W, dtype):
    """(9, H*W) {0,1} masks: mask[t, h*W+w] = 1 iff (h+dh, w+dw) is in-bounds."""
    h = jnp.arange(H)[:, None]
    w = jnp.arange(W)[None, :]
    rows = []
    for dh in (-1, 0, 1):
        for dw in (-1, 0, 1):
            ok = (h + dh >= 0) & (h + dh < H) & (w + dw >= 0) & (w + dw < W)
            rows.append(ok.reshape(H * W))
    return jnp.stack(rows, axis=0).astype(dtype)


def basic_block_forward(x_nchw, params, *, eps=1e-5, compute_dtype=jnp.float32,
                        images_per_block=None):
    """BasicBlock(inplanes=planes, stride=1, downsample=None), inference BN."""
    N, C, H, W = x_nchw.shape
    HW = H * W
    w1_t, b1 = _prep_conv_bn(params["w1"], params["bn1"], eps, compute_dtype)
    w2_t, b2 = _prep_conv_bn(params["w2"], params["bn2"], eps, compute_dtype)
    assert w1_t.shape[0] == C, "BasicBlock w/o downsample needs inplanes==planes"

    # Process as many images as possible per grid step (amortizes per-step
    # overhead).  Cap at 8 images / block; re-derive against VMEM for big C.
    if images_per_block is None:
        images_per_block = max(d for d in range(1, min(N, 8) + 1) if N % d == 0)
    NB = images_per_block
    assert N % NB == 0

    masks = _make_tap_masks(H, W, compute_dtype)            # (9, HW)
    x_flat = x_nchw.reshape(N, C, HW)     # lane-dense last dim, still NCHW

    kernel = functools.partial(_basic_block_kernel, W=W,
                               compute_dtype=compute_dtype)
    out = pl.pallas_call(
        kernel,
        out_shape=jax.ShapeDtypeStruct((N, C, HW), x_nchw.dtype),
        grid=(N // NB,),
        in_specs=[
            pl.BlockSpec((NB, C, HW), lambda g: (g, 0, 0)),     # x group
            pl.BlockSpec((9, HW), lambda g: (0, 0)),            # tap masks
            pl.BlockSpec((C, 9 * C), lambda g: (0, 0)),         # w1 (folded)
            pl.BlockSpec((C, 1), lambda g: (0, 0)),             # b1
            pl.BlockSpec((C, 9 * C), lambda g: (0, 0)),         # w2 (folded)
            pl.BlockSpec((C, 1), lambda g: (0, 0)),             # b2
        ],
        out_specs=pl.BlockSpec((NB, C, HW), lambda g: (g, 0, 0)),
        scratch_shapes=[
            pltpu.VMEM((9 * C, HW), compute_dtype),             # im2col buffer
        ],
        # "parallel" lets the grid (when >1 step) shard across cores; at the
        # tested size everything fits in one step.  Set vmem_limit_bytes here
        # for realistic (C>=64, 56x56) shapes on v5e/v7x.
        compiler_params=pltpu.CompilerParams(
            dimension_semantics=("parallel",)),
    )(x_flat, masks, w1_t, b1, w2_t, b2)
    return out.reshape(N, C, H, W)


def _reference_forward(x_nchw, params, eps=1e-5):
    """Pure-JAX reference (lax conv, NCHW) for correctness check."""
    dn = lax.conv_dimension_numbers(x_nchw.shape, params["w1"].shape,
                                    ("NCHW", "OIHW", "NCHW"))

    def conv_bn(h, w, bn):
        y = lax.conv_general_dilated(h, w, (1, 1), ((1, 1), (1, 1)),
                                     dimension_numbers=dn,
                                     precision=lax.Precision.HIGHEST)
        s, b = _fold_bn(*bn, eps=eps)
        return y * s.reshape(1, -1, 1, 1) + b.reshape(1, -1, 1, 1)

    out = jnp.maximum(conv_bn(x_nchw, params["w1"], params["bn1"]), 0.0)
    out = conv_bn(out, params["w2"], params["bn2"]) + x_nchw
    return jnp.maximum(out, 0.0)


def init_params(key, inplanes, planes):
    ks = jax.random.split(key, 10)
    # Conv weights in PyTorch OIHW layout, bias=False (as in conv3x3).
    w1 = 0.1 * jax.random.normal(ks[0], (planes, inplanes, 3, 3), jnp.float32)
    w2 = 0.1 * jax.random.normal(ks[1], (planes, planes, 3, 3), jnp.float32)

    def bn(k0, k1, k2, k3):
        return (1.0 + 0.1 * jax.random.normal(k0, (planes,), jnp.float32),   # gamma
                0.1 * jax.random.normal(k1, (planes,), jnp.float32),         # beta
                0.05 * jax.random.normal(k2, (planes,), jnp.float32),        # mean
                jnp.abs(1.0 + 0.1 * jax.random.normal(k3, (planes,), jnp.float32)))  # var

    return {"w1": w1, "w2": w2, "bn1": bn(*ks[2:6]), "bn2": bn(*ks[6:10])}


if __name__ == "__main__":
    key = jax.random.PRNGKey(0)
    kx, kp = jax.random.split(key)

    N, C, H, W = 2, 4, 16, 16        # inplanes = planes = 4, stride=1, no downsample
    x = jax.random.normal(kx, (N, C, H, W), jnp.float32)
    params = init_params(kp, inplanes=C, planes=C)

    out = jax.block_until_ready(basic_block_forward(x, params))
    ref = jax.block_until_ready(_reference_forward(x, params))

    assert out.shape == (N, C, H, W)
    assert jnp.allclose(out, ref, atol=1e-4, rtol=1e-4), "mismatch vs reference"

    print("KERNEL_OK")
</pallas_src>

<mosaic_0001>
module attributes {stable_mosaic.version = 11 : i64} {
  func.func @_basic_block_kernel(%arg0: i32, %arg1: memref<2x4x256xf32, #tpu.memory_space<vmem>>, %arg2: memref<9x256xf32, #tpu.memory_space<vmem>>, %arg3: memref<4x36xf32, #tpu.memory_space<vmem>>, %arg4: memref<4x1xf32, #tpu.memory_space<vmem>>, %arg5: memref<4x36xf32, #tpu.memory_space<vmem>>, %arg6: memref<4x1xf32, #tpu.memory_space<vmem>>, %arg7: memref<2x4x256xf32, #tpu.memory_space<vmem>>, %arg8: memref<36x256xf32, #tpu.memory_space<vmem>>) attributes {dimension_semantics = [#tpu.dimension_semantics<parallel>], iteration_bounds = array<i64: 1>, scalar_prefetch = 0 : i64, scratch_operands = 1 : i64, tpu.core_type = #tpu.core_type<tc>, window_params = [{transform_indices = @transform_0, window_bounds = array<i64: 2, 4, 256>}, {pipeline_mode = #tpu.pipeline_mode<synchronous>, transform_indices = @transform_1, window_bounds = array<i64: 9, 256>}, {pipeline_mode = #tpu.pipeline_mode<synchronous>, transform_indices = @transform_2, window_bounds = array<i64: 4, 36>}, {pipeline_mode = #tpu.pipeline_mode<synchronous>, transform_indices = @transform_3, window_bounds = array<i64: 4, 1>}, {pipeline_mode = #tpu.pipeline_mode<synchronous>, transform_indices = @transform_4, window_bounds = array<i64: 4, 36>}, {pipeline_mode = #tpu.pipeline_mode<synchronous>, transform_indices = @transform_5, window_bounds = array<i64: 4, 1>}, {transform_indices = @transform_6, window_bounds = array<i64: 2, 4, 256>}]} {
    %c0 = arith.constant 0 : index
    %c0_0 = arith.constant 0 : index
    %0 = vector.load %arg2[%c0, %c0_0] : memref<9x256xf32, #tpu.memory_space<vmem>>, vector<9x256xf32>
    %1 = vector.extract_strided_slice %0 {offsets = [0, 0], sizes = [1, 256], strides = [1, 1]} : vector<9x256xf32> to vector<1x256xf32>
    %2 = vector.extract_strided_slice %0 {offsets = [1, 0], sizes = [1, 256], strides = [1, 1]} : vector<9x256xf32> to vector<1x256xf32>
    %3 = vector.extract_strided_slice %0 {offsets = [2, 0], sizes = [1, 256], strides = [1, 1]} : vector<9x256xf32> to vector<1x256xf32>
    %4 = vector.extract_strided_slice %0 {offsets = [3, 0], sizes = [1, 256], strides = [1, 1]} : vector<9x256xf32> to vector<1x256xf32>
    %5 = vector.extract_strided_slice %0 {offsets = [5, 0], sizes = [1, 256], strides = [1, 1]} : vector<9x256xf32> to vector<1x256xf32>
    %6 = vector.extract_strided_slice %0 {offsets = [6, 0], sizes = [1, 256], strides = [1, 1]} : vector<9x256xf32> to vector<1x256xf32>
    %7 = vector.extract_strided_slice %0 {offsets = [7, 0], sizes = [1, 256], strides = [1, 1]} : vector<9x256xf32> to vector<1x256xf32>
    %8 = vector.extract_strided_slice %0 {offsets = [8, 0], sizes = [1, 256], strides = [1, 1]} : vector<9x256xf32> to vector<1x256xf32>
    %c0_1 = arith.constant 0 : index
    %c0_2 = arith.constant 0 : index
    %9 = vector.load %arg3[%c0_1, %c0_2] : memref<4x36xf32, #tpu.memory_space<vmem>>, vector<4x36xf32>
    %c0_3 = arith.constant 0 : index
    %c0_4 = arith.constant 0 : index
    %10 = vector.load %arg5[%c0_3, %c0_4] : memref<4x36xf32, #tpu.memory_space<vmem>>, vector<4x36xf32>
    %c0_5 = arith.constant 0 : index
    %c0_6 = arith.constant 0 : index
    %11 = vector.load %arg4[%c0_5, %c0_6] : memref<4x1xf32, #tpu.memory_space<vmem>>, vector<4x1xf32>
    %12 = vector.shape_cast %11 : vector<4x1xf32> to vector<4x1xf32>
    %13 = vector.broadcast %12 : vector<4x1xf32> to vector<4x256xf32>
    %c0_7 = arith.constant 0 : index
    %c0_8 = arith.constant 0 : index
    %14 = vector.load %arg6[%c0_7, %c0_8] : memref<4x1xf32, #tpu.memory_space<vmem>>, vector<4x1xf32>
    %15 = vector.shape_cast %14 : vector<4x1xf32> to vector<4x1xf32>
    %16 = vector.broadcast %15 : vector<4x1xf32> to vector<4x256xf32>
    %c0_9 = arith.constant 0 : index
    %c0_10 = arith.constant 0 : index
    %c0_11 = arith.constant 0 : index
    %17 = vector.load %arg1[%c0_9, %c0_10, %c0_11] : memref<2x4x256xf32, #tpu.memory_space<vmem>>, vector<1x4x256xf32>
    %18 = vector.shape_cast %17 : vector<1x4x256xf32> to vector<4x256xf32>
    %c17_i32 = arith.constant 17 : i32
    %19 = tpu.dynamic_rotate %18 by %c17_i32 dim 1 : vector<4x256xf32>, i32 -> vector<4x256xf32>
    %20 = vector.broadcast %1 : vector<1x256xf32> to vector<4x256xf32>
    %21 = arith.mulf %19, %20 : vector<4x256xf32>
    %c0_12 = arith.constant 0 : index
    %c0_13 = arith.constant 0 : index
    %22 = vector.load %arg8[%c0_12, %c0_13] : memref<36x256xf32, #tpu.memory_space<vmem>>, vector<4x256xf32>
    tpu.vector_store %arg8[%c0_12, %c0_13], %21 {strides = array<i32>} : memref<36x256xf32, #tpu.memory_space<vmem>>, vector<4x256xf32>,
    %c16_i32 = arith.constant 16 : i32
    %23 = tpu.dynamic_rotate %18 by %c16_i32 dim 1 : vector<4x256xf32>, i32 -> vector<4x256xf32>
    %24 = vector.broadcast %2 : vector<1x256xf32> to vector<4x256xf32>
    %25 = arith.mulf %23, %24 : vector<4x256xf32>
    %c4 = arith.constant 4 : index
    %c0_14 = arith.constant 0 : index
    %26 = vector.load %arg8[%c4, %c0_14] : memref<36x256xf32, #tpu.memory_space<vmem>>, vector<4x256xf32>
    tpu.vector_store %arg8[%c4, %c0_14], %25 {strides = array<i32>} : memref<36x256xf32, #tpu.memory_space<vmem>>, vector<4x256xf32>,
    %c15_i32 = arith.constant 15 : i32
    %27 = tpu.dynamic_rotate %18 by %c15_i32 dim 1 : vector<4x256xf32>, i32 -> vector<4x256xf32>
    %28 = vector.broadcast %3 : vector<1x256xf32> to vector<4x256xf32>
    %29 = arith.mulf %27, %28 : vector<4x256xf32>
    %c8 = arith.constant 8 : index
    %c0_15 = arith.constant 0 : index
    %30 = vector.load %arg8[%c8, %c0_15] : memref<36x256xf32, #tpu.memory_space<vmem>>, vector<4x256xf32>
    tpu.vector_store %arg8[%c8, %c0_15], %29 {strides = array<i32>} : memref<36x256xf32, #tpu.memory_space<vmem>>, vector<4x256xf32>,
    %c1_i32 = arith.constant 1 : i32
    %31 = tpu.dynamic_rotate %18 by %c1_i32 dim 1 : vector<4x256xf32>, i32 -> vector<4x256xf32>
    %32 = vector.broadcast %4 : vector<1x256xf32> to vector<4x256xf32>
    %33 = arith.mulf %31, %32 : vector<4x256xf32>
    %c12 = arith.constant 12 : index
    %c0_16 = arith.constant 0 : index
    %34 = vector.load %arg8[%c12, %c0_16] : memref<36x256xf32, #tpu.memory_space<vmem>>, vector<4x256xf32>
    tpu.vector_store %arg8[%c12, %c0_16], %33 {strides = array<i32>} : memref<36x256xf32, #tpu.memory_space<vmem>>, vector<4x256xf32>,
    %c16 = arith.constant 16 : index
    %c0_17 = arith.constant 0 : index
    %35 = vector.load %arg8[%c16, %c0_17] : memref<36x256xf32, #tpu.memory_space<vmem>>, vector<4x256xf32>
    tpu.vector_store %arg8[%c16, %c0_17], %18 {strides = array<i32>} : memref<36x256xf32, #tpu.memory_space<vmem>>, vector<4x256xf32>,
    %c255_i32 = arith.constant 255 : i32
    %36 = tpu.dynamic_rotate %18 by %c255_i32 dim 1 : vector<4x256xf32>, i32 -> vector<4x256xf32>
    %37 = vector.broadcast %5 : vector<1x256xf32> to vector<4x256xf32>
    %38 = arith.mulf %36, %37 : vector<4x256xf32>
    %c20 = arith.constant 20 : index
    %c0_18 = arith.constant 0 : index
    %39 = vector.load %arg8[%c20, %c0_18] : memref<36x256xf32, #tpu.memory_space<vmem>>, vector<4x256xf32>
    tpu.vector_store %arg8[%c20, %c0_18], %38 {strides = array<i32>} : memref<36x256xf32, #tpu.memory_space<vmem>>, vector<4x256xf32>,
    %c241_i32 = arith.constant 241 : i32
    %40 = tpu.dynamic_rotate %18 by %c241_i32 dim 1 : vector<4x256xf32>, i32 -> vector<4x256xf32>
    %41 = vector.broadcast %6 : vector<1x256xf32> to vector<4x256xf32>
    %42 = arith.mulf %40, %41 : vector<4x256xf32>
    %c24 = arith.constant 24 : index
    %c0_19 = arith.constant 0 : index
    %43 = vector.load %arg8[%c24, %c0_19] : memref<36x256xf32, #tpu.memory_space<vmem>>, vector<4x256xf32>
    tpu.vector_store %arg8[%c24, %c0_19], %42 {strides = array<i32>} : memref<36x256xf32, #tpu.memory_space<vmem>>, vector<4x256xf32>,
    %c240_i32 = arith.constant 240 : i32
    %44 = tpu.dynamic_rotate %18 by %c240_i32 dim 1 : vector<4x256xf32>, i32 -> vector<4x256xf32>
    %45 = vector.broadcast %7 : vector<1x256xf32> to vector<4x256xf32>
    %46 = arith.mulf %44, %45 : vector<4x256xf32>
    %c28 = arith.constant 28 : index
    %c0_20 = arith.constant 0 : index
    %47 = vector.load %arg8[%c28, %c0_20] : memref<36x256xf32, #tpu.memory_space<vmem>>, vector<4x256xf32>
    tpu.vector_store %arg8[%c28, %c0_20], %46 {strides = array<i32>} : memref<36x256xf32, #tpu.memory_space<vmem>>, vector<4x256xf32>,
    %c239_i32 = arith.constant 239 : i32
    %48 = tpu.dynamic_rotate %18 by %c239_i32 dim 1 : vector<4x256xf32>, i32 -> vector<4x256xf32>
    %49 = vector.broadcast %8 : vector<1x256xf32> to vector<4x256xf32>
    %50 = arith.mulf %48, %49 : vector<4x256xf32>
    %c32 = arith.constant 32 : index
    %c0_21 = arith.constant 0 : index
    %51 = vector.load %arg8[%c32, %c0_21] : memref<36x256xf32, #tpu.memory_space<vmem>>, vector<4x256xf32>
    tpu.vector_store %arg8[%c32, %c0_21], %50 {strides = array<i32>} : memref<36x256xf32, #tpu.memory_space<vmem>>, vector<4x256xf32>,
    %c0_22 = arith.constant 0 : index
    %c0_23 = arith.constant 0 : index
    %52 = vector.load %arg8[%c0_22, %c0_23] : memref<36x256xf32, #tpu.memory_space<vmem>>, vector<36x256xf32>
    %cst = arith.constant dense<0.000000e+00> : vector<4x256xf32>
    %53 = tpu.matmul %9, %52, %cst {dimension_numbers = #tpu.dot_dimension_numbers<[1], [0], [0], [1], [0, 0, 1, 1], [], []>} : vector<4x36xf32>, vector<36x256xf32>, vector<4x256xf32> -> vector<4x256xf32>
    %54 = arith.addf %53, %13 : vector<4x256xf32>
    %cst_24 = arith.constant 0.000000e+00 : f32
    %55 = vector.broadcast %cst_24 : f32 to vector<4x256xf32>
    %56 = arith.maximumf %54, %55 : vector<4x256xf32>
    %c17_i32_25 = arith.constant 17 : i32
    %57 = tpu.dynamic_rotate %56 by %c17_i32_25 dim 1 : vector<4x256xf32>, i32 -> vector<4x256xf32>
    %58 = vector.broadcast %1 : vector<1x256xf32> to vector<4x256xf32>
    %59 = arith.mulf %57, %58 : vector<4x256xf32>
    %c0_26 = arith.constant 0 : index
    %c0_27 = arith.constant 0 : index
    %60 = vector.load %arg8[%c0_26, %c0_27] : memref<36x256xf32, #tpu.memory_space<vmem>>, vector<4x256xf32>
    tpu.vector_store %arg8[%c0_26, %c0_27], %59 {strides = array<i32>} : memref<36x256xf32, #tpu.memory_space<vmem>>, vector<4x256xf32>,
    %c16_i32_28 = arith.constant 16 : i32
    %61 = tpu.dynamic_rotate %56 by %c16_i32_28 dim 1 : vector<4x256xf32>, i32 -> vector<4x256xf32>
    %62 = vector.broadcast %2 : vector<1x256xf32> to vector<4x256xf32>
    %63 = arith.mulf %61, %62 : vector<4x256xf32>
    %c4_29 = arith.constant 4 : index
    %c0_30 = arith.constant 0 : index
    %64 = vector.load %arg8[%c4_29, %c0_30] : memref<36x256xf32, #tpu.memory_space<vmem>>, vector<4x256xf32>
    tpu.vector_store %arg8[%c4_29, %c0_30], %63 {strides = array<i32>} : memref<36x256xf32, #tpu.memory_space<vmem>>, vector<4x256xf32>,
    %c15_i32_31 = arith.constant 15 : i32
    %65 = tpu.dynamic_rotate %56 by %c15_i32_31 dim 1 : vector<4x256xf32>, i32 -> vector<4x256xf32>
    %66 = vector.broadcast %3 : vector<1x256xf32> to vector<4x256xf32>
    %67 = arith.mulf %65, %66 : vector<4x256xf32>
    %c8_32 = arith.constant 8 : index
    %c0_33 = arith.constant 0 : index
    %68 = vector.load %arg8[%c8_32, %c0_33] : memref<36x256xf32, #tpu.memory_space<vmem>>, vector<4x256xf32>
    tpu.vector_store %arg8[%c8_32, %c0_33], %67 {strides = array<i32>} : memref<36x256xf32, #tpu.memory_space<vmem>>, vector<4x256xf32>,
    %c1_i32_34 = arith.constant 1 : i32
    %69 = tpu.dynamic_rotate %56 by %c1_i32_34 dim 1 : vector<4x256xf32>, i32 -> vector<4x256xf32>
    %70 = vector.broadcast %4 : vector<1x256xf32> to vector<4x256xf32>
    %71 = arith.mulf %69, %70 : vector<4x256xf32>
    %c12_35 = arith.constant 12 : index
    %c0_36 = arith.constant 0 : index
    %72 = vector.load %arg8[%c12_35, %c0_36] : memref<36x256xf32, #tpu.memory_space<vmem>>, vector<4x256xf32>
    tpu.vector_store %arg8[%c12_35, %c0_36], %71 {strides = array<i32>} : memref<36x256xf32, #tpu.memory_space<vmem>>, vector<4x256xf32>,
    %c16_37 = arith.constant 16 : index
    %c0_38 = arith.constant 0 : index
    %73 = vector.load %arg8[%c16_37, %c0_38] : memref<36x256xf32, #tpu.memory_space<vmem>>, vector<4x256xf32>
    tpu.vector_store %arg8[%c16_37, %c0_38], %56 {strides = array<i32>} : memref<36x256xf32, #tpu.memory_space<vmem>>, vector<4x256xf32>,
    %c255_i32_39 = arith.constant 255 : i32
    %74 = tpu.dynamic_rotate %56 by %c255_i32_39 dim 1 : vector<4x256xf32>, i32 -> vector<4x256xf32>
    %75 = vector.broadcast %5 : vector<1x256xf32> to vector<4x256xf32>
    %76 = arith.mulf %74, %75 : vector<4x256xf32>
    %c20_40 = arith.constant 20 : index
    %c0_41 = arith.constant 0 : index
    %77 = vector.load %arg8[%c20_40, %c0_41] : memref<36x256xf32, #tpu.memory_space<vmem>>, vector<4x256xf32>
    tpu.vector_store %arg8[%c20_40, %c0_41], %76 {strides = array<i32>} : memref<36x256xf32, #tpu.memory_space<vmem>>, vector<4x256xf32>,
    %c241_i32_42 = arith.constant 241 : i32
    %78 = tpu.dynamic_rotate %56 by %c241_i32_42 dim 1 : vector<4x256xf32>, i32 -> vector<4x256xf32>
    %79 = vector.broadcast %6 : vector<1x256xf32> to vector<4x256xf32>
    %80 = arith.mulf %78, %79 : vector<4x256xf32>
    %c24_43 = arith.constant 24 : index
    %c0_44 = arith.constant 0 : index
    %81 = vector.load %arg8[%c24_43, %c0_44] : memref<36x256xf32, #tpu.memory_space<vmem>>, vector<4x256xf32>
    tpu.vector_store %arg8[%c24_43, %c0_44], %80 {strides = array<i32>} : memref<36x256xf32, #tpu.memory_space<vmem>>, vector<4x256xf32>,
    %c240_i32_45 = arith.constant 240 : i32
    %82 = tpu.dynamic_rotate %56 by %c240_i32_45 dim 1 : vector<4x256xf32>, i32 -> vector<4x256xf32>
    %83 = vector.broadcast %7 : vector<1x256xf32> to vector<4x256xf32>
    %84 = arith.mulf %82, %83 : vector<4x256xf32>
    %c28_46 = arith.constant 28 : index
    %c0_47 = arith.constant 0 : index
    %85 = vector.load %arg8[%c28_46, %c0_47] : memref<36x256xf32, #tpu.memory_space<vmem>>, vector<4x256xf32>
    tpu.vector_store %arg8[%c28_46, %c0_47], %84 {strides = array<i32>} : memref<36x256xf32, #tpu.memory_space<vmem>>, vector<4x256xf32>,
    %c239_i32_48 = arith.constant 239 : i32
    %86 = tpu.dynamic_rotate %56 by %c239_i32_48 dim 1 : vector<4x256xf32>, i32 -> vector<4x256xf32>
    %87 = vector.broadcast %8 : vector<1x256xf32> to vector<4x256xf32>
    %88 = arith.mulf %86, %87 : vector<4x256xf32>
    %c32_49 = arith.constant 32 : index
    %c0_50 = arith.constant 0 : index
    %89 = vector.load %arg8[%c32_49, %c0_50] : memref<36x256xf32, #tpu.memory_space<vmem>>, vector<4x256xf32>
    tpu.vector_store %arg8[%c32_49, %c0_50], %88 {strides = array<i32>} : memref<36x256xf32, #tpu.memory_space<vmem>>, vector<4x256xf32>,
    %c0_51 = arith.constant 0 : index
    %c0_52 = arith.constant 0 : index
    %90 = vector.load %arg8[%c0_51, %c0_52] : memref<36x256xf32, #tpu.memory_space<vmem>>, vector<36x256xf32>
    %cst_53 = arith.constant dense<0.000000e+00> : vector<4x256xf32>
    %91 = tpu.matmul %10, %90, %cst_53 {dimension_numbers = #tpu.dot_dimension_numbers<[1], [0], [0], [1], [0, 0, 1, 1], [], []>} : vector<4x36xf32>, vector<36x256xf32>, vector<4x256xf32> -> vector<4x256xf32>
    %92 = arith.addf %91, %16 : vector<4x256xf32>
    %93 = arith.addf %92, %18 : vector<4x256xf32>
    %cst_54 = arith.constant 0.000000e+00 : f32
    %94 = vector.broadcast %cst_54 : f32 to vector<4x256xf32>
    %95 = arith.maximumf %93, %94 : vector<4x256xf32>
    %c0_55 = arith.constant 0 : index
    %c0_56 = arith.constant 0 : index
    %c0_57 = arith.constant 0 : index
    %96 = vector.load %arg7[%c0_55, %c0_56, %c0_57] : memref<2x4x256xf32, #tpu.memory_space<vmem>>, vector<1x4x256xf32>
    %97 = vector.shape_cast %96 : vector<1x4x256xf32> to vector<4x256xf32>
    %98 = vector.shape_cast %95 : vector<4x256xf32> to vector<1x4x256xf32>
    tpu.vector_store %arg7[%c0_55, %c0_56, %c0_57], %98 {strides = array<i32>} : memref<2x4x256xf32, #tpu.memory_space<vmem>>, vector<1x4x256xf32>,
    %c1 = arith.constant 1 : index
    %c0_58 = arith.constant 0 : index
    %c0_59 = arith.constant 0 : index
    %99 = vector.load %arg1[%c1, %c0_58, %c0_59] : memref<2x4x256xf32, #tpu.memory_space<vmem>>, vector<1x4x256xf32>
    %100 = vector.shape_cast %99 : vector<1x4x256xf32> to vector<4x256xf32>
    %c17_i32_60 = arith.constant 17 : i32
    %101 = tpu.dynamic_rotate %100 by %c17_i32_60 dim 1 : vector<4x256xf32>, i32 -> vector<4x256xf32>
    %102 = vector.broadcast %1 : vector<1x256xf32> to vector<4x256xf32>
    %103 = arith.mulf %101, %102 : vector<4x256xf32>
    %c0_61 = arith.constant 0 : index
    %c0_62 = arith.constant 0 : index
    %104 = vector.load %arg8[%c0_61, %c0_62] : memref<36x256xf32, #tpu.memory_space<vmem>>, vector<4x256xf32>
    tpu.vector_store %arg8[%c0_61, %c0_62], %103 {strides = array<i32>} : memref<36x256xf32, #tpu.memory_space<vmem>>, vector<4x256xf32>,
    %c16_i32_63 = arith.constant 16 : i32
    %105 = tpu.dynamic_rotate %100 by %c16_i32_63 dim 1 : vector<4x256xf32>, i32 -> vector<4x256xf32>
    %106 = vector.broadcast %2 : vector<1x256xf32> to vector<4x256xf32>
    %107 = arith.mulf %105, %106 : vector<4x256xf32>
    %c4_64 = arith.constant 4 : index
    %c0_65 = arith.constant 0 : index
    %108 = vector.load %arg8[%c4_64, %c0_65] : memref<36x256xf32, #tpu.memory_space<vmem>>, vector<4x256xf32>
    tpu.vector_store %arg8[%c4_64, %c0_65], %107 {strides = array<i32>} : memref<36x256xf32, #tpu.memory_space<vmem>>, vector<4x256xf32>,
    %c15_i32_66 = arith.constant 15 : i32
    %109 = tpu.dynamic_rotate %100 by %c15_i32_66 dim 1 : vector<4x256xf32>, i32 -> vector<4x256xf32>
    %110 = vector.broadcast %3 : vector<1x256xf32> to vector<4x256xf32>
    %111 = arith.mulf %109, %110 : vector<4x256xf32>
    %c8_67 = arith.constant 8 : index
    %c0_68 = arith.constant 0 : index
    %112 = vector.load %arg8[%c8_67, %c0_68] : memref<36x256xf32, #tpu.memory_space<vmem>>, vector<4x256xf32>
    tpu.vector_store %arg8[%c8_67, %c0_68], %111 {strides = array<i32>} : memref<36x256xf32, #tpu.memory_space<vmem>>, vector<4x256xf32>,
    %c1_i32_69 = arith.constant 1 : i32
    %113 = tpu.dynamic_rotate %100 by %c1_i32_69 dim 1 : vector<4x256xf32>, i32 -> vector<4x256xf32>
    %114 = vector.broadcast %4 : vector<1x256xf32> to vector<4x256xf32>
    %115 = arith.mulf %113, %114 : vector<4x256xf32>
    %c12_70 = arith.constant 12 : index
    %c0_71 = arith.constant 0 : index
    %116 = vector.load %arg8[%c12_70, %c0_71] : memref<36x256xf32, #tpu.memory_space<vmem>>, vector<4x256xf32>
    tpu.vector_store %arg8[%c12_70, %c0_71], %115 {strides = array<i32>} : memref<36x256xf32, #tpu.memory_space<vmem>>, vector<4x256xf32>,
    %c16_72 = arith.constant 16 : index
    %c0_73 = arith.constant 0 : index
    %117 = vector.load %arg8[%c16_72, %c0_73] : memref<36x256xf32, #tpu.memory_space<vmem>>, vector<4x256xf32>
    tpu.vector_store %arg8[%c16_72, %c0_73], %100 {strides = array<i32>} : memref<36x256xf32, #tpu.memory_space<vmem>>, vector<4x256xf32>,
    %c255_i32_74 = arith.constant 255 : i32
    %118 = tpu.dynamic_rotate %100 by %c255_i32_74 dim 1 : vector<4x256xf32>, i32 -> vector<4x256xf32>
    %119 = vector.broadcast %5 : vector<1x256xf32> to vector<4x256xf32>
    %120 = arith.mulf %118, %119 : vector<4x256xf32>
    %c20_75 = arith.constant 20 : index
    %c0_76 = arith.constant 0 : index
    %121 = vector.load %arg8[%c20_75, %c0_76] : memref<36x256xf32, #tpu.memory_space<vmem>>, vector<4x256xf32>
    tpu.vector_store %arg8[%c20_75, %c0_76], %120 {strides = array<i32>} : memref<36x256xf32, #tpu.memory_space<vmem>>, vector<4x256xf32>,
    %c241_i32_77 = arith.constant 241 : i32
    %122 = tpu.dynamic_rotate %100 by %c241_i32_77 dim 1 : vector<4x256xf32>, i32 -> vector<4x256xf32>
    %123 = vector.broadcast %6 : vector<1x256xf32> to vector<4x256xf32>
    %124 = arith.mulf %122, %123 : vector<4x256xf32>
    %c24_78 = arith.constant 24 : index
    %c0_79 = arith.constant 0 : index
    %125 = vector.load %arg8[%c24_78, %c0_79] : memref<36x256xf32, #tpu.memory_space<vmem>>, vector<4x256xf32>
    tpu.vector_store %arg8[%c24_78, %c0_79], %124 {strides = array<i32>} : memref<36x256xf32, #tpu.memory_space<vmem>>, vector<4x256xf32>,
    %c240_i32_80 = arith.constant 240 : i32
    %126 = tpu.dynamic_rotate %100 by %c240_i32_80 dim 1 : vector<4x256xf32>, i32 -> vector<4x256xf32>
    %127 = vector.broadcast %7 : vector<1x256xf32> to vector<4x256xf32>
    %128 = arith.mulf %126, %127 : vector<4x256xf32>
    %c28_81 = arith.constant 28 : index
    %c0_82 = arith.constant 0 : index
    %129 = vector.load %arg8[%c28_81, %c0_82] : memref<36x256xf32, #tpu.memory_space<vmem>>, vector<4x256xf32>
    tpu.vector_store %arg8[%c28_81, %c0_82], %128 {strides = array<i32>} : memref<36x256xf32, #tpu.memory_space<vmem>>, vector<4x256xf32>,
    %c239_i32_83 = arith.constant 239 : i32
    %130 = tpu.dynamic_rotate %100 by %c239_i32_83 dim 1 : vector<4x256xf32>, i32 -> vector<4x256xf32>
    %131 = vector.broadcast %8 : vector<1x256xf32> to vector<4x256xf32>
    %132 = arith.mulf %130, %131 : vector<4x256xf32>
    %c32_84 = arith.constant 32 : index
    %c0_85 = arith.constant 0 : index
    %133 = vector.load %arg8[%c32_84, %c0_85] : memref<36x256xf32, #tpu.memory_space<vmem>>, vector<4x256xf32>
    tpu.vector_store %arg8[%c32_84, %c0_85], %132 {strides = array<i32>} : memref<36x256xf32, #tpu.memory_space<vmem>>, vector<4x256xf32>,
    %c0_86 = arith.constant 0 : index
    %c0_87 = arith.constant 0 : index
    %134 = vector.load %arg8[%c0_86, %c0_87] : memref<36x256xf32, #tpu.memory_space<vmem>>, vector<36x256xf32>
    %cst_88 = arith.constant dense<0.000000e+00> : vector<4x256xf32>
    %135 = tpu.matmul %9, %134, %cst_88 {dimension_numbers = #tpu.dot_dimension_numbers<[1], [0], [0], [1], [0, 0, 1, 1], [], []>} : vector<4x36xf32>, vector<36x256xf32>, vector<4x256xf32> -> vector<4x256xf32>
    %136 = arith.addf %135, %13 : vector<4x256xf32>
    %cst_89 = arith.constant 0.000000e+00 : f32
    %137 = vector.broadcast %cst_89 : f32 to vector<4x256xf32>
    %138 = arith.maximumf %136, %137 : vector<4x256xf32>
    %c17_i32_90 = arith.constant 17 : i32
    %139 = tpu.dynamic_rotate %138 by %c17_i32_90 dim 1 : vector<4x256xf32>, i32 -> vector<4x256xf32>
    %140 = vector.broadcast %1 : vector<1x256xf32> to vector<4x256xf32>
    %141 = arith.mulf %139, %140 : vector<4x256xf32>
    %c0_91 = arith.constant 0 : index
    %c0_92 = arith.constant 0 : index
    %142 = vector.load %arg8[%c0_91, %c0_92] : memref<36x256xf32, #tpu.memory_space<vmem>>, vector<4x256xf32>
    tpu.vector_store %arg8[%c0_91, %c0_92], %141 {strides = array<i32>} : memref<36x256xf32, #tpu.memory_space<vmem>>, vector<4x256xf32>,
    %c16_i32_93 = arith.constant 16 : i32
    %143 = tpu.dynamic_rotate %138 by %c16_i32_93 dim 1 : vector<4x256xf32>, i32 -> vector<4x256xf32>
    %144 = vector.broadcast %2 : vector<1x256xf32> to vector<4x256xf32>
    %145 = arith.mulf %143, %144 : vector<4x256xf32>
    %c4_94 = arith.constant 4 : index
    %c0_95 = arith.constant 0 : index
    %146 = vector.load %arg8[%c4_94, %c0_95] : memref<36x256xf32, #tpu.memory_space<vmem>>, vector<4x256xf32>
    tpu.vector_store %arg8[%c4_94, %c0_95], %145 {strides = array<i32>} : memref<36x256xf32, #tpu.memory_space<vmem>>, vector<4x256xf32>,
    %c15_i32_96 = arith.constant 15 : i32
    %147 = tpu.dynamic_rotate %138 by %c15_i32_96 dim 1 : vector<4x256xf32>, i32 -> vector<4x256xf32>
    %148 = vector.broadcast %3 : vector<1x256xf32> to vector<4x256xf32>
    %149 = arith.mulf %147, %148 : vector<4x256xf32>
    %c8_97 = arith.constant 8 : index
    %c0_98 = arith.constant 0 : index
    %150 = vector.load %arg8[%c8_97, %c0_98] : memref<36x256xf32, #tpu.memory_space<vmem>>, vector<4x256xf32>
    tpu.vector_store %arg8[%c8_97, %c0_98], %149 {strides = array<i32>} : memref<36x256xf32, #tpu.memory_space<vmem>>, vector<4x256xf32>,
    %c1_i32_99 = arith.constant 1 : i32
    %151 = tpu.dynamic_rotate %138 by %c1_i32_99 dim 1 : vector<4x256xf32>, i32 -> vector<4x256xf32>
    %152 = vector.broadcast %4 : vector<1x256xf32> to vector<4x256xf32>
    %153 = arith.mulf %151, %152 : vector<4x256xf32>
    %c12_100 = arith.constant 12 : index
    %c0_101 = arith.constant 0 : index
    %154 = vector.load %arg8[%c12_100, %c0_101] : memref<36x256xf32, #tpu.memory_space<vmem>>, vector<4x256xf32>
    tpu.vector_store %arg8[%c12_100, %c0_101], %153 {strides = array<i32>} : memref<36x256xf32, #tpu.memory_space<vmem>>, vector<4x256xf32>,
    %c16_102 = arith.constant 16 : index
    %c0_103 = arith.constant 0 : index
    %155 = vector.load %arg8[%c16_102, %c0_103] : memref<36x256xf32, #tpu.memory_space<vmem>>, vector<4x256xf32>
    tpu.vector_store %arg8[%c16_102, %c0_103], %138 {strides = array<i32>} : memref<36x256xf32, #tpu.memory_space<vmem>>, vector<4x256xf32>,
    %c255_i32_104 = arith.constant 255 : i32
    %156 = tpu.dynamic_rotate %138 by %c255_i32_104 dim 1 : vector<4x256xf32>, i32 -> vector<4x256xf32>
    %157 = vector.broadcast %5 : vector<1x256xf32> to vector<4x256xf32>
    %158 = arith.mulf %156, %157 : vector<4x256xf32>
    %c20_105 = arith.constant 20 : index
    %c0_106 = arith.constant 0 : index
    %159 = vector.load %arg8[%c20_105, %c0_106] : memref<36x256xf32, #tpu.memory_space<vmem>>, vector<4x256xf32>
    tpu.vector_store %arg8[%c20_105, %c0_106], %158 {strides = array<i32>} : memref<36x256xf32, #tpu.memory_space<vmem>>, vector<4x256xf32>,
    %c241_i32_107 = arith.constant 241 : i32
    %160 = tpu.dynamic_rotate %138 by %c241_i32_107 dim 1 : vector<4x256xf32>, i32 -> vector<4x256xf32>
    %161 = vector.broadcast %6 : vector<1x256xf32> to vector<4x256xf32>
    %162 = arith.mulf %160, %161 : vector<4x256xf32>
    %c24_108 = arith.constant 24 : index
    %c0_109 = arith.constant 0 : index
    %163 = vector.load %arg8[%c24_108, %c0_109] : memref<36x256xf32, #tpu.memory_space<vmem>>, vector<4x256xf32>
    tpu.vector_store %arg8[%c24_108, %c0_109], %162 {strides = array<i32>} : memref<36x256xf32, #tpu.memory_space<vmem>>, vector<4x256xf32>,
    %c240_i32_110 = arith.constant 240 : i32
    %164 = tpu.dynamic_rotate %138 by %c240_i32_110 dim 1 : vector<4x256xf32>, i32 -> vector<4x256xf32>
    %165 = vector.broadcast %7 : vector<1x256xf32> to vector<4x256xf32>
    %166 = arith.mulf %164, %165 : vector<4x256xf32>
    %c28_111 = arith.constant 28 : index
    %c0_112 = arith.constant 0 : index
    %167 = vector.load %arg8[%c28_111, %c0_112] : memref<36x256xf32, #tpu.memory_space<vmem>>, vector<4x256xf32>
    tpu.vector_store %arg8[%c28_111, %c0_112], %166 {strides = array<i32>} : memref<36x256xf32, #tpu.memory_space<vmem>>, vector<4x256xf32>,
    %c239_i32_113 = arith.constant 239 : i32
    %168 = tpu.dynamic_rotate %138 by %c239_i32_113 dim 1 : vector<4x256xf32>, i32 -> vector<4x256xf32>
    %169 = vector.broadcast %8 : vector<1x256xf32> to vector<4x256xf32>
    %170 = arith.mulf %168, %169 : vector<4x256xf32>
    %c32_114 = arith.constant 32 : index
    %c0_115 = arith.constant 0 : index
    %171 = vector.load %arg8[%c32_114, %c0_115] : memref<36x256xf32, #tpu.memory_space<vmem>>, vector<4x256xf32>
    tpu.vector_store %arg8[%c32_114, %c0_115], %170 {strides = array<i32>} : memref<36x256xf32, #tpu.memory_space<vmem>>, vector<4x256xf32>,
    %c0_116 = arith.constant 0 : index
    %c0_117 = arith.constant 0 : index
    %172 = vector.load %arg8[%c0_116, %c0_117] : memref<36x256xf32, #tpu.memory_space<vmem>>, vector<36x256xf32>
    %cst_118 = arith.constant dense<0.000000e+00> : vector<4x256xf32>
    %173 = tpu.matmul %10, %172, %cst_118 {dimension_numbers = #tpu.dot_dimension_numbers<[1], [0], [0], [1], [0, 0, 1, 1], [], []>} : vector<4x36xf32>, vector<36x256xf32>, vector<4x256xf32> -> vector<4x256xf32>
    %174 = arith.addf %173, %16 : vector<4x256xf32>
    %175 = arith.addf %174, %100 : vector<4x256xf32>
    %cst_119 = arith.constant 0.000000e+00 : f32
    %176 = vector.broadcast %cst_119 : f32 to vector<4x256xf32>
    %177 = arith.maximumf %175, %176 : vector<4x256xf32>
    %c1_120 = arith.constant 1 : index
    %c0_121 = arith.constant 0 : index
    %c0_122 = arith.constant 0 : index
    %178 = vector.load %arg7[%c1_120, %c0_121, %c0_122] : memref<2x4x256xf32, #tpu.memory_space<vmem>>, vector<1x4x256xf32>
    %179 = vector.shape_cast %178 : vector<1x4x256xf32> to vector<4x256xf32>
    %180 = vector.shape_cast %177 : vector<4x256xf32> to vector<1x4x256xf32>
    tpu.vector_store %arg7[%c1_120, %c0_121, %c0_122], %180 {strides = array<i32>} : memref<2x4x256xf32, #tpu.memory_space<vmem>>, vector<1x4x256xf32>,
    return
  }
  func.func @transform_0(%arg0: i32) -> (i32, i32, i32) {
    %c0_i32 = arith.constant 0 : i32
    %c0_i32_0 = arith.constant 0 : i32
    %c0_i32_1 = arith.constant 0 : i32
    return %arg0, %c0_i32, %c0_i32_0 : i32, i32, i32
  }
  func.func @transform_1(%arg0: i32) -> (i32, i32) {
    %c0_i32 = arith.constant 0 : i32
    %c0_i32_0 = arith.constant 0 : i32
    %c0_i32_1 = arith.constant 0 : i32
    return %c0_i32, %c0_i32_0 : i32, i32
  }
  func.func @transform_2(%arg0: i32) -> (i32, i32) {
    %c0_i32 = arith.constant 0 : i32
    %c0_i32_0 = arith.constant 0 : i32
    %c0_i32_1 = arith.constant 0 : i32
    return %c0_i32, %c0_i32_0 : i32, i32
  }
  func.func @transform_3(%arg0: i32) -> (i32, i32) {
    %c0_i32 = arith.constant 0 : i32
    %c0_i32_0 = arith.constant 0 : i32
    %c0_i32_1 = arith.constant 0 : i32
    return %c0_i32, %c0_i32_0 : i32, i32
  }
  func.func @transform_4(%arg0: i32) -> (i32, i32) {
    %c0_i32 = arith.constant 0 : i32
    %c0_i32_0 = arith.constant 0 : i32
    %c0_i32_1 = arith.constant 0 : i32
    return %c0_i32, %c0_i32_0 : i32, i32
  }
  func.func @transform_5(%arg0: i32) -> (i32, i32) {
    %c0_i32 = arith.constant 0 : i32
    %c0_i32_0 = arith.constant 0 : i32
    %c0_i32_1 = arith.constant 0 : i32
    return %c0_i32, %c0_i32_0 : i32, i32
  }
  func.func @transform_6(%arg0: i32) -> (i32, i32, i32) {
    %c0_i32 = arith.constant 0 : i32
    %c0_i32_0 = arith.constant 0 : i32
    %c0_i32_1 = arith.constant 0 : i32
    return %arg0, %c0_i32, %c0_i32_0 : i32, i32, i32
  }
}

</mosaic_0001>

<llo_original>
// kernel: tpu_custom_call.1
$region0: #{tpu_custom_call.1}
  #allocation0 [shape = 'u32[]', space=smem, size = 0x4, offset = 0x4, fixed_abs, tag = 'smem constant byte address 0x4 - core index']
  #allocation1 [shape = 'u32[144,128]{1,0:T(1,128)}', space=vmem, size = 0x12000, scoped, tag = 'internal scratch']
  #allocation2 [shape = 'f32[36,256]{1,0:T(8,128)}', space=vmem, size = 0xa000, scoped, tag = 'scratch operand']
  %s0 = inlined_call_operand.hbm [shape: f32[2,4,256], index: 0, kind: input, shape index: {}]
  %s1 = inlined_call_operand.hbm [shape: f32[9,256], index: 1, kind: input, shape index: {}]
  %s2 = inlined_call_operand.vmem [shape: f32[4,36], index: 2, kind: input, shape index: {}]
  %s3 = inlined_call_operand.vmem [shape: f32[4,1], index: 3, kind: input, shape index: {}]
  %s4 = inlined_call_operand.vmem [shape: f32[4,36], index: 4, kind: input, shape index: {}]
  %s5 = inlined_call_operand.vmem [shape: f32[4,1], index: 5, kind: input, shape index: {}]
  %s6 = inlined_call_operand.hbm [shape: f32[2,4,256], index: 6, kind: output, shape index: {}]
  %s7 = sld [smem:[#allocation0]]
  $region42: #{tpu_custom_call.1} parent=0
    _
  %s9 = ssub.s32 1, %s7
  %s10 = scalar_select 0, %s9, %s7
  $region1: #{tpu_custom_call.1} parent=0
    #allocation3 [shape = 'u8[8192]{0}', space=vmem, size = 0x2000, scoped, tag = 'input window, operand 0, single buffered']
    #allocation4 [shape = 's32[1]{0}', space=sflag, size = 0x4, scoped, tag = 'scoped memory for tpu_custom_call.1']
    #allocation5 [shape = 's32[1]{0}', space=sflag, size = 0x4, scoped, tag = 'scoped memory for tpu_custom_call.1']
    #allocation6 [shape = 'u8[16384]{0}', space=vmem, size = 0x4000, scoped, tag = 'input window, operand 1, single buffered']
    #allocation7 [shape = 's32[1]{0}', space=sflag, size = 0x4, scoped, tag = 'scoped memory for tpu_custom_call.1']
    #allocation8 [shape = 'u8[8192]{0}', space=vmem, size = 0x2000, scoped, tag = 'output window, operand 0, single buffered']
    %11 = vsyncpa [#allocation4], 0
    %12 = vsyncpa [#allocation7], 0
    %13 = vsyncpa [#allocation5], 0
    // Predicated region
    $region2: #{tpu_custom_call.1} parent=1 // pred_check
      _
    $region3: #{tpu_custom_call.1} parent=1 // pred_check_branch
      %15 = sbr.rel (0) target = $region5
    $region4: #{tpu_custom_call.1} parent=1 // pred_region
      %s17 = ssub.s32 256, 256
      %18 = vsyncadd [#allocation4], %s17
      %s19 = sshll.u32 [#allocation3], 4
      %s20 = int_to_ptr.vmem [resolvable:$true] %s19
      %25 = dma.hbm_to_vmem [thread:$0]  %s0, 256, %s20, [#allocation4], 128, 128, 8
    $region5: #{tpu_custom_call.1} parent=1 // pred_fallthru
      _
    // Predicated region
    $region6: #{tpu_custom_call.1} parent=1 // pred_check
      _
    $region7: #{tpu_custom_call.1} parent=1 // pred_check_branch
      %27 = sbr.rel (0) target = $region9
    $region8: #{tpu_custom_call.1} parent=1 // pred_region
      %s29 = ssub.s32 512, 512
      %30 = vsyncadd [#allocation7], %s29
      %s31 = sshll.u32 [#allocation6], 4
      %s32 = int_to_ptr.vmem [resolvable:$true] %s31
      %37 = dma.hbm_to_vmem [thread:$0]  %s1, 512, %s32, [#allocation7], 256, 256, 16
    $region9: #{tpu_custom_call.1} parent=1 // pred_fallthru
      _
    // Predicated region
    $region10: #{tpu_custom_call.1} parent=1 // pred_check
      _
    $region11: #{tpu_custom_call.1} parent=1 // pred_check_branch
      %39 = sbr.rel (0) target = $region13
    $region12: #{tpu_custom_call.1} parent=1 // pred_region
      _
    $region13: #{tpu_custom_call.1} parent=1 // pred_fallthru
      _
    // Predicated region
    $region14: #{tpu_custom_call.1} parent=1 // pred_check
      _
    $region15: #{tpu_custom_call.1} parent=1 // pred_check_branch
      %41 = sbr.rel (0) target = $region17
    $region16: #{tpu_custom_call.1} parent=1 // pred_region
      _
    $region17: #{tpu_custom_call.1} parent=1 // pred_fallthru
      _
    // Predicated region
    $region18: #{tpu_custom_call.1} parent=1 // pred_check
      _
    $region19: #{tpu_custom_call.1} parent=1 // pred_check_branch
      %43 = sbr.rel (0) target = $region21
    $region20: #{tpu_custom_call.1} parent=1 // pred_region
      _
    $region21: #{tpu_custom_call.1} parent=1 // pred_fallthru
      _
    // Predicated region
    $region22: #{tpu_custom_call.1} parent=1 // pred_check
      _
    $region23: #{tpu_custom_call.1} parent=1 // pred_check_branch
      %45 = sbr.rel (0) target = $region25
    $region24: #{tpu_custom_call.1} parent=1 // pred_region
      _
    $region25: #{tpu_custom_call.1} parent=1 // pred_fallthru
      _
    // Predicated region
    $region26: #{tpu_custom_call.1} parent=1 // pred_check
      _
    $region27: #{tpu_custom_call.1} parent=1 // pred_check_branch
      %47 = sbr.rel (0) target = $region29
    $region28: #{tpu_custom_call.1} parent=1 // pred_region
      %48 = dma.done [#allocation4], 256
    $region29: #{tpu_custom_call.1} parent=1 // pred_fallthru
      _
    // Predicated region
    $region30: #{tpu_custom_call.1} parent=1 // pred_check
      _
    $region31: #{tpu_custom_call.1} parent=1 // pred_check_branch
      %50 = sbr.rel (0) target = $region33
    $region32: #{tpu_custom_call.1} parent=1 // pred_region
      %51 = dma.done [#allocation7], 512
    $region33: #{tpu_custom_call.1} parent=1 // pred_fallthru
      _
    %v52 = vld [vmem:[#allocation6] sm:$0xff]
    %v53 = vld [vmem:[#allocation6 + $0x8] sm:$0xff]
    %v54 = vld [vmem:[#allocation6 + $0x10] sm:$0x1]
    %v55 = vld [vmem:[#allocation6 + $0x18] sm:$0x1]
    %v56 = vld [vmem:[%s2] sm:$0xf]
    %v57 = vld [vmem:[%s4] sm:$0xf]
    %v58 = vld [vmem:[%s3] sm:$0xf]
    %60 = vset.pattern.permute.xlu0 0
    %61 = vperm.xlu0 %60, %v58
    %v62 = vpop.permute.xlu0 %61
    %v64 = vld [vmem:[%s5] sm:$0xf]
    %66 = vset.pattern.permute.xlu0 0
    %67 = vperm.xlu0 %66, %v64
    %v68 = vpop.permute.xlu0 %67
    %v70 = vld [vmem:[#allocation3] sm:$0xff]
    %v72 = vcombine.high %v70, %v70
    %74 = vrot.lane.b32.xlu0 %v70, 17
    %v75 = vpop.permute.xlu0 %74
    %76 = vrot.lane.b32.xlu0 %v72, 17
    %v77 = vpop.permute.xlu0 %76
    %v78 = vlaneseq
    %v79 = vand.u32 %v78, 127
    %vm80 = vcmp.lt.s32.totalorder %v79, 17
    %v81 = vsel %vm80, %v75, %v77
    %v82 = vsel %vm80, %v77, %v75
    %v83 = vlaneseq
    %v84 = vshrl.u32 %v83, 7
    %v85 = vsub.s32 0, %v84
    %v86 = vrot.slane %v52, %v85
    %v87 = vlaneseq
    %v88 = vshrl.u32 %v87, 7
    %v89 = vsub.s32 0, %v88
    %v90 = vrot.slane %v53, %v89
    %v91 = vmul.f32 %v82, %v86
    %v92 = vmul.f32 %v81, %v90
    %93 = vst [vmem:[#allocation2] sm:$0xf] %v91
    %94 = vst [vmem:[#allocation2 + $0x8] sm:$0xf] %v92
    %95 = vrot.lane.b32.xlu0 %v70, 16
    %v96 = vpop.permute.xlu0 %95
    %97 = vrot.lane.b32.xlu0 %v72, 16
    %v98 = vpop.permute.xlu0 %97
    %vm99 = vcmp.lt.s32.totalorder %v79, 16
    %v100 = vsel %vm99, %v96, %v98
    %v101 = vsel %vm99, %v98, %v96
    %v102 = vlaneseq
    %v103 = vshrl.u32 %v102, 7
    %v104 = vsub.s32 1, %v103
    %v105 = vrot.slane %v52, %v104
    %v106 = vlaneseq
    %v107 = vshrl.u32 %v106, 7
    %v108 = vsub.s32 1, %v107
    %v109 = vrot.slane %v53, %v108
    %v110 = vmul.f32 %v101, %v105
    %v111 = vmul.f32 %v100, %v109
    %v114 = vrot.slane %v110, 4
    %v115 = vrot.slane %v111, 4
    %118 = vst [vmem:[#allocation2] sm:$0xf0] %v114
    %119 = vst [vmem:[#allocation2 + $0x8] sm:$0xf0] %v115
    %120 = vrot.lane.b32.xlu0 %v70, 15
    %v121 = vpop.permute.xlu0 %120
    %122 = vrot.lane.b32.xlu0 %v72, 15
    %v123 = vpop.permute.xlu0 %122
    %vm124 = vcmp.lt.s32.totalorder %v79, 15
    %v125 = vsel %vm124, %v121, %v123
    %v126 = vsel %vm124, %v123, %v121
    %v127 = vlaneseq
    %v128 = vshrl.u32 %v127, 7
    %v129 = vsub.s32 2, %v128
    %v130 = vrot.slane %v52, %v129
    %v131 = vlaneseq
    %v132 = vshrl.u32 %v131, 7
    %v133 = vsub.s32 2, %v132
    %v134 = vrot.slane %v53, %v133
    %v135 = vmul.f32 %v126, %v130
    %v136 = vmul.f32 %v125, %v134
    %137 = vst [vmem:[#allocation2 + $0x10] sm:$0xf] %v135
    %138 = vst [vmem:[#allocation2 + $0x18] sm:$0xf] %v136
    %139 = vrot.lane.b32.xlu0 %v70, 1
    %v140 = vpop.permute.xlu0 %139
    %141 = vrot.lane.b32.xlu0 %v72, 1
    %v142 = vpop.permute.xlu0 %141
    %vm143 = vcmp.lt.s32.totalorder %v79, 1
    %v144 = vsel %vm143, %v140, %v142
    %v145 = vsel %vm143, %v142, %v140
    %v146 = vlaneseq
    %v147 = vshrl.u32 %v146, 7
    %v148 = vsub.s32 3, %v147
    %v149 = vrot.slane %v52, %v148
    %v150 = vlaneseq
    %v151 = vshrl.u32 %v150, 7
    %v152 = vsub.s32 3, %v151
    %v153 = vrot.slane %v53, %v152
    %v154 = vmul.f32 %v145, %v149
    %v155 = vmul.f32 %v144, %v153
    %v158 = vrot.slane %v154, 4
    %v159 = vrot.slane %v155, 4
    %162 = vst [vmem:[#allocation2 + $0x10] sm:$0xf0] %v158
    %163 = vst [vmem:[#allocation2 + $0x18] sm:$0xf0] %v159
    %164 = vst [vmem:[#allocation2 + $0x20] sm:$0xf] %v70
    %165 = vst [vmem:[#allocation2 + $0x28] sm:$0xf] %v72
    %166 = vrot.lane.b32.xlu0 %v70, 127
    %v167 = vpop.permute.xlu0 %166
    %168 = vrot.lane.b32.xlu0 %v72, 127
    %v169 = vpop.permute.xlu0 %168
    %vm170 = vcmp.lt.s32.totalorder %v79, 127
    %v171 = vsel %vm170, %v167, %v169
    %v172 = vsel %vm170, %v169, %v167
    %v173 = vlaneseq
    %v174 = vshrl.u32 %v173, 7
    %v175 = vsub.s32 5, %v174
    %v176 = vrot.slane %v52, %v175
    %v177 = vlaneseq
    %v178 = vshrl.u32 %v177, 7
    %v179 = vsub.s32 5, %v178
    %v180 = vrot.slane %v53, %v179
    %v181 = vmul.f32 %v171, %v176
    %v182 = vmul.f32 %v172, %v180
    %v185 = vrot.slane %v181, 4
    %v186 = vrot.slane %v182, 4
    %189 = vst [vmem:[#allocation2 + $0x20] sm:$0xf0] %v185
    %190 = vst [vmem:[#allocation2 + $0x28] sm:$0xf0] %v186
    %191 = vrot.lane.b32.xlu0 %v70, 113
    %v192 = vpop.permute.xlu0 %191
    %193 = vrot.lane.b32.xlu0 %v72, 113
    %v194 = vpop.permute.xlu0 %193
    %vm195 = vcmp.lt.s32.totalorder %v79, 113
    %v196 = vsel %vm195, %v192, %v194
    %v197 = vsel %vm195, %v194, %v192
    %v198 = vlaneseq
    %v199 = vshrl.u32 %v198, 7
    %v200 = vsub.s32 6, %v199
    %v201 = vrot.slane %v52, %v200
    %v202 = vlaneseq
    %v203 = vshrl.u32 %v202, 7
    %v204 = vsub.s32 6, %v203
    %v205 = vrot.slane %v53, %v204
    %v206 = vmul.f32 %v196, %v201
    %v207 = vmul.f32 %v197, %v205
    %208 = vst [vmem:[#allocation2 + $0x30] sm:$0xf] %v206
    %209 = vst [vmem:[#allocation2 + $0x38] sm:$0xf] %v207
    %210 = vrot.lane.b32.xlu0 %v70, 112
    %v211 = vpop.permute.xlu0 %210
    %212 = vrot.lane.b32.xlu0 %v72, 112
    %v213 = vpop.permute.xlu0 %212
    %vm214 = vcmp.lt.s32.totalorder %v79, 112
    %v215 = vsel %vm214, %v211, %v213
    %v216 = vsel %vm214, %v213, %v211
    %v217 = vlaneseq
    %v218 = vshrl.u32 %v217, 7
    %v219 = vsub.s32 7, %v218
    %v220 = vrot.slane %v52, %v219
    %v221 = vlaneseq
    %v222 = vshrl.u32 %v221, 7
    %v223 = vsub.s32 7, %v222
    %v224 = vrot.slane %v53, %v223
    %v225 = vmul.f32 %v215, %v220
    %v226 = vmul.f32 %v216, %v224
    %v229 = vrot.slane %v225, 4
    %v230 = vrot.slane %v226, 4
    %233 = vst [vmem:[#allocation2 + $0x30] sm:$0xf0] %v229
    %234 = vst [vmem:[#allocation2 + $0x38] sm:$0xf0] %v230
    %235 = vrot.lane.b32.xlu0 %v70, 111
    %v236 = vpop.permute.xlu0 %235
    %237 = vrot.lane.b32.xlu0 %v72, 111
    %v238 = vpop.permute.xlu0 %237
    %vm239 = vcmp.lt.s32.totalorder %v79, 111
    %v240 = vsel %vm239, %v236, %v238
    %v241 = vsel %vm239, %v238, %v236
    %v242 = vlaneseq
    %v243 = vshrl.u32 %v242, 7
    %v244 = vsub.s32 0, %v243
    %v245 = vrot.slane %v54, %v244
    %v246 = vlaneseq
    %v247 = vshrl.u32 %v246, 7
    %v248 = vsub.s32 0, %v247
    %v249 = vrot.slane %v55, %v248
    %v250 = vmul.f32 %v240, %v245
    %v251 = vmul.f32 %v241, %v249
    %252 = vst [vmem:[#allocation2 + $0x40] sm:$0xf] %v250
    %253 = vst [vmem:[#allocation2 + $0x48] sm:$0xf] %v251
    %v254 = vld [vmem:[#allocation2] sm:$0xff]
    %v255 = vld [vmem:[#allocation2 + $0x8] sm:$0xff]
    %v256 = vld [vmem:[#allocation2 + $0x10] sm:$0xff]
    %v257 = vld [vmem:[#allocation2 + $0x18] sm:$0xff]
    %v258 = vld [vmem:[#allocation2 + $0x20] sm:$0xff]
    %v259 = vld [vmem:[#allocation2 + $0x28] sm:$0xff]
    %v260 = vld [vmem:[#allocation2 + $0x30] sm:$0xff]
    %v261 = vld [vmem:[#allocation2 + $0x38] sm:$0xff]
    %v262 = vld [vmem:[#allocation2 + $0x40] sm:$0xf]
    %v263 = vld [vmem:[#allocation2 + $0x48] sm:$0xf]
    %vm264 = vcmask 293888
    %v266 = vsel %vm264, %v56, 0
    %vm268 = vcmask 1043456
    %v270 = vsel %vm268, %v262, 0
    %v273 = vsel %vm268, %v263, 0
    %275 = vmatprep.subr.mxu0 0.0
    %276 = vmatpush1.msra.mxu0 0.0
    %277 = vmatprep.subr.mxu0 0.0
    %278 = vmatpush1.msra.mxu0 0.0
    %279 = vmatprep.subr.mxu0 0.0
    %280 = vmatpush1.msra.mxu0 0.0
    %281 = vmatprep.subr.mxu0 0.0
    %282 = vmatpush1.msra.mxu0 0.0
    %283 = vmatprep.subr.mxu0 0.0
    %284 = vmatpush1.msra.mxu0 0.0
    %285 = vmatprep.subr.mxu0 0.0
    %286 = vmatpush1.msra.mxu0 0.0
    %287 = vmatprep.subr.mxu0 0.0
    %288 = vmatpush1.msra.mxu0 0.0
    %289 = vmatprep.subr.mxu0 0.0
    %290 = vmatpush1.msra.mxu0 0.0
    %291 = vmatprep.subr.mxu0 0.0
    %292 = vmatpush1.msra.mxu0 0.0
    %293 = vmatprep.subr.mxu0 0.0
    %294 = vmatpush1.msra.mxu0 0.0
    %295 = vmatprep.subr.mxu0 0.0
    %296 = vmatpush1.msra.mxu0 0.0
    %297 = vmatprep.subr.mxu0 %v273
    %298 = vmatpush1.msra.mxu0 %v270
    %299 = vmatprep.subr.mxu0 %v261
    %300 = vmatpush1.msra.mxu0 %v260
    %301 = vmatprep.subr.mxu0 %v259
    %302 = vmatpush1.msra.mxu0 %v258
    %303 = vmatprep.subr.mxu0 %v257
    %304 = vmatpush1.msra.mxu0 %v256
    %305 = vmatprep.subr.mxu0 %v255
    %306 = vmatpush1.msra.mxu0 %v254
    %307 = vmatprep.subr.mxu0 0.0
    %308 = vmatpush2.msra.mxu0 0.0
    %309 = vmatprep.subr.mxu0 0.0
    %310 = vmatpush2.msra.mxu0 0.0
    %311 = vmatprep.subr.mxu0 0.0
    %312 = vmatpush2.msra.mxu0 0.0
    %313 = vmatprep.subr.mxu0 0.0
    %314 = vmatpush2.msra.mxu0 0.0
    %315 = vmatprep.subr.mxu0 0.0
    %316 = vmatpush2.msra.mxu0 0.0
    %317 = vmatprep.subr.mxu0 0.0
    %318 = vmatpush2.msra.mxu0 0.0
    %319 = vmatprep.subr.mxu0 0.0
    %320 = vmatpush2.msra.mxu0 0.0
    %321 = vmatprep.subr.mxu0 0.0
    %322 = vmatpush2.msra.mxu0 0.0
    %323 = vmatprep.subr.mxu0 0.0
    %324 = vmatpush2.msra.mxu0 0.0
    %325 = vmatprep.subr.mxu0 0.0
    %326 = vmatpush2.msra.mxu0 0.0
    %327 = vmatprep.subr.mxu0 0.0
    %328 = vmatpush2.msra.mxu0 0.0
    %329 = vmatprep.subr.mxu0 0.0
    %330 = vmatpush2.msra.mxu0 0.0
    %331 = vmatprep.subr.mxu0 0.0
    %332 = vmatpush2.msra.mxu0 0.0
    %333 = vmatprep.subr.mxu0 0.0
    %334 = vmatpush2.msra.mxu0 0.0
    %335 = vmatprep.subr.mxu0 0.0
    %336 = vmatpush2.msra.mxu0 0.0
    %337 = vmatprep.subr.mxu0 0.0
    %338 = vmatpush2.msra.mxu0 0.0
    %339 = vmatprep.mubr.f32.mxu0 0.0
    %340 = vmatmul.mubr.f32.gmra.mxu0 %v266
    %v341 = vpop.f32.mrf.mxu0
    %v342 = vadd.f32 %v62, %v341
    %v343 = vpop.f32.mrf.mxu0
    %v344 = vadd.f32 %v62, %v343
    %345 = vdwg.mxu0
    %v346 = vmax.f32 %v342, 0.0
    %v347 = vmax.f32 %v344, 0.0
    %348 = vrot.lane.b32.xlu0 %v346, 17
    %v349 = vpop.permute.xlu0 %348
    %350 = vrot.lane.b32.xlu0 %v347, 17
    %v351 = vpop.permute.xlu0 %350
    %v352 = vsel %vm80, %v349, %v351
    %v353 = vsel %vm80, %v351, %v349
    %v354 = vmul.f32 %v353, %v86
    %v355 = vmul.f32 %v352, %v90
    %356 = vst [vmem:[#allocation2] sm:$0xf] %v354
    %357 = vst [vmem:[#allocation2 + $0x8] sm:$0xf] %v355
    %358 = vrot.lane.b32.xlu0 %v346, 16
    %v359 = vpop.permute.xlu0 %358
    %360 = vrot.lane.b32.xlu0 %v347, 16
    %v361 = vpop.permute.xlu0 %360
    %v362 = vsel %vm99, %v359, %v361
    %v363 = vsel %vm99, %v361, %v359
    %v364 = vmul.f32 %v363, %v105
    %v365 = vmul.f32 %v362, %v109
    %v368 = vrot.slane %v364, 4
    %v369 = vrot.slane %v365, 4
    %372 = vst [vmem:[#allocation2] sm:$0xf0] %v368
    %373 = vst [vmem:[#allocation2 + $0x8] sm:$0xf0] %v369
    %374 = vrot.lane.b32.xlu0 %v346, 15
    %v375 = vpop.permute.xlu0 %374
    %376 = vrot.lane.b32.xlu0 %v347, 15
    %v377 = vpop.permute.xlu0 %376
    %v378 = vsel %vm124, %v375, %v377
    %v379 = vsel %vm124, %v377, %v375
    %v380 = vmul.f32 %v379, %v130
    %v381 = vmul.f32 %v378, %v134
    %382 = vst [vmem:[#allocation2 + $0x10] sm:$0xf] %v380
    %383 = vst [vmem:[#allocation2 + $0x18] sm:$0xf] %v381
    %384 = vrot.lane.b32.xlu0 %v346, 1
    %v385 = vpop.permute.xlu0 %384
    %386 = vrot.lane.b32.xlu0 %v347, 1
    %v387 = vpop.permute.xlu0 %386
    %v388 = vsel %vm143, %v385, %v387
    %v389 = vsel %vm143, %v387, %v385
    %v390 = vmul.f32 %v389, %v149
    %v391 = vmul.f32 %v388, %v153
    %v394 = vrot.slane %v390, 4
    %v395 = vrot.slane %v391, 4
    %398 = vst [vmem:[#allocation2 + $0x10] sm:$0xf0] %v394
    %399 = vst [vmem:[#allocation2 + $0x18] sm:$0xf0] %v395
    %400 = vst [vmem:[#allocation2 + $0x20] sm:$0xf] %v346
    %401 = vst [vmem:[#allocation2 + $0x28] sm:$0xf] %v347
    %402 = vrot.lane.b32.xlu0 %v346, 127
    %v403 = vpop.permute.xlu0 %402
    %404 = vrot.lane.b32.xlu0 %v347, 127
    %v405 = vpop.permute.xlu0 %404
    %v406 = vsel %vm170, %v403, %v405
    %v407 = vsel %vm170, %v405, %v403
    %v408 = vmul.f32 %v406, %v176
    %v409 = vmul.f32 %v407, %v180
    %v412 = vrot.slane %v408, 4
    %v413 = vrot.slane %v409, 4
    %416 = vst [vmem:[#allocation2 + $0x20] sm:$0xf0] %v412
    %417 = vst [vmem:[#allocation2 + $0x28] sm:$0xf0] %v413
    %418 = vrot.lane.b32.xlu0 %v346, 113
    %v419 = vpop.permute.xlu0 %418
    %420 = vrot.lane.b32.xlu0 %v347, 113
    %v421 = vpop.permute.xlu0 %420
    %v422 = vsel %vm195, %v419, %v421
    %v423 = vsel %vm195, %v421, %v419
    %v424 = vmul.f32 %v422, %v201
    %v425 = vmul.f32 %v423, %v205
    %426 = vst [vmem:[#allocation2 + $0x30] sm:$0xf] %v424
    %427 = vst [vmem:[#allocation2 + $0x38] sm:$0xf] %v425
    %428 = vrot.lane.b32.xlu0 %v346, 112
    %v429 = vpop.permute.xlu0 %428
    %430 = vrot.lane.b32.xlu0 %v347, 112
    %v431 = vpop.permute.xlu0 %430
    %v432 = vsel %vm214, %v429, %v431
    %v433 = vsel %vm214, %v431, %v429
    %v434 = vmul.f32 %v432, %v220
    %v435 = vmul.f32 %v433, %v224
    %v438 = vrot.slane %v434, 4
    %v439 = vrot.slane %v435, 4
    %442 = vst [vmem:[#allocation2 + $0x30] sm:$0xf0] %v438
    %443 = vst [vmem:[#allocation2 + $0x38] sm:$0xf0] %v439
    %444 = vrot.lane.b32.xlu0 %v346, 111
    %v445 = vpop.permute.xlu0 %444
    %446 = vrot.lane.b32.xlu0 %v347, 111
    %v447 = vpop.permute.xlu0 %446
    %v448 = vsel %vm239, %v445, %v447
    %v449 = vsel %vm239, %v447, %v445
    %v450 = vmul.f32 %v448, %v245
    %v451 = vmul.f32 %v449, %v249
    %452 = vst [vmem:[#allocation2 + $0x40] sm:$0xf] %v450
    %453 = vst [vmem:[#allocation2 + $0x48] sm:$0xf] %v451
    %v454 = vld [vmem:[#allocation2] sm:$0xff]
    %v455 = vld [vmem:[#allocation2 + $0x8] sm:$0xff]
    %v456 = vld [vmem:[#allocation2 + $0x10] sm:$0xff]
    %v457 = vld [vmem:[#allocation2 + $0x18] sm:$0xff]
    %v458 = vld [vmem:[#allocation2 + $0x20] sm:$0xff]
    %v459 = vld [vmem:[#allocation2 + $0x28] sm:$0xff]
    %v460 = vld [vmem:[#allocation2 + $0x30] sm:$0xff]
    %v461 = vld [vmem:[#allocation2 + $0x38] sm:$0xff]
    %v462 = vld [vmem:[#allocation2 + $0x40] sm:$0xf]
    %v463 = vld [vmem:[#allocation2 + $0x48] sm:$0xf]
    %v465 = vsel %vm264, %v57, 0
    %v468 = vsel %vm268, %v462, 0
    %v471 = vsel %vm268, %v463, 0
    %473 = vmatprep.subr.mxu0 0.0
    %474 = vmatpush1.msra.mxu0 0.0
    %475 = vmatprep.subr.mxu0 0.0
    %476 = vmatpush1.msra.mxu0 0.0
    %477 = vmatprep.subr.mxu0 0.0
    %478 = vmatpush1.msra.mxu0 0.0
    %479 = vmatprep.subr.mxu0 0.0
    %480 = vmatpush1.msra.mxu0 0.0
    %481 = vmatprep.subr.mxu0 0.0
    %482 = vmatpush1.msra.mxu0 0.0
    %483 = vmatprep.subr.mxu0 0.0
    %484 = vmatpush1.msra.mxu0 0.0
    %485 = vmatprep.subr.mxu0 0.0
    %486 = vmatpush1.msra.mxu0 0.0
    %487 = vmatprep.subr.mxu0 0.0
    %488 = vmatpush1.msra.mxu0 0.0
    %489 = vmatprep.subr.mxu0 0.0
    %490 = vmatpush1.msra.mxu0 0.0
    %491 = vmatprep.subr.mxu0 0.0
    %492 = vmatpush1.msra.mxu0 0.0
    %493 = vmatprep.subr.mxu0 0.0
    %494 = vmatpush1.msra.mxu0 0.0
    %495 = vmatprep.subr.mxu0 %v471
    %496 = vmatpush1.msra.mxu0 %v468
    %497 = vmatprep.subr.mxu0 %v461
    %498 = vmatpush1.msra.mxu0 %v460
    %499 = vmatprep.subr.mxu0 %v459
    %500 = vmatpush1.msra.mxu0 %v458
    %501 = vmatprep.subr.mxu0 %v457
    %502 = vmatpush1.msra.mxu0 %v456
    %503 = vmatprep.subr.mxu0 %v455
    %504 = vmatpush1.msra.mxu0 %v454
    %505 = vmatprep.subr.mxu0 0.0
    %506 = vmatpush2.msra.mxu0 0.0
    %507 = vmatprep.subr.mxu0 0.0
    %508 = vmatpush2.msra.mxu0 0.0
    %509 = vmatprep.subr.mxu0 0.0
    %510 = vmatpush2.msra.mxu0 0.0
    %511 = vmatprep.subr.mxu0 0.0
    %512 = vmatpush2.msra.mxu0 0.0
    %513 = vmatprep.subr.mxu0 0.0
    %514 = vmatpush2.msra.mxu0 0.0
    %515 = vmatprep.subr.mxu0 0.0
    %516 = vmatpush2.msra.mxu0 0.0
    %517 = vmatprep.subr.mxu0 0.0
    %518 = vmatpush2.msra.mxu0 0.0
    %519 = vmatprep.subr.mxu0 0.0
    %520 = vmatpush2.msra.mxu0 0.0
    %521 = vmatprep.subr.mxu0 0.0
    %522 = vmatpush2.msra.mxu0 0.0
    %523 = vmatprep.subr.mxu0 0.0
    %524 = vmatpush2.msra.mxu0 0.0
    %525 = vmatprep.subr.mxu0 0.0
    %526 = vmatpush2.msra.mxu0 0.0
    %527 = vmatprep.subr.mxu0 0.0
    %528 = vmatpush2.msra.mxu0 0.0
    %529 = vmatprep.subr.mxu0 0.0
    %530 = vmatpush2.msra.mxu0 0.0
    %531 = vmatprep.subr.mxu0 0.0
    %532 = vmatpush2.msra.mxu0 0.0
    %533 = vmatprep.subr.mxu0 0.0
    %534 = vmatpush2.msra.mxu0 0.0
    %535 = vmatprep.subr.mxu0 0.0
    %536 = vmatpush2.msra.mxu0 0.0
    %537 = vmatprep.mubr.f32.mxu0 0.0
    %538 = vmatmul.mubr.f32.gmra.mxu0 %v465
    %v539 = vpop.f32.mrf.mxu0
    %v540 = vadd.f32 %v68, %v539
    %v541 = vpop.f32.mrf.mxu0
    %v542 = vadd.f32 %v68, %v541
    %543 = vdwg.mxu0
    %v544 = vadd.f32 %v540, %v70
    %v545 = vadd.f32 %v542, %v72
    %v546 = vmax.f32 %v544, 0.0
    %v547 = vmax.f32 %v545, 0.0
    %v550 = vcombine.low %v546, %v547
    %552 = vst [vmem:[#allocation8] sm:$0xff] %v550
    %s553 = scalar_lea.vmem [#allocation3], 8
    %v554 = vld [vmem:[%s553] sm:$0xff]
    %v556 = vcombine.high %v554, %v554
    %558 = vrot.lane.b32.xlu0 %v554, 17
    %v559 = vpop.permute.xlu0 %558
    %560 = vrot.lane.b32.xlu0 %v556, 17
    %v561 = vpop.permute.xlu0 %560
    %v562 = vsel %vm80, %v559, %v561
    %v563 = vsel %vm80, %v561, %v559
    %v564 = vmul.f32 %v563, %v86
    %v565 = vmul.f32 %v562, %v90
    %566 = vst [vmem:[#allocation2] sm:$0xf] %v564
    %567 = vst [vmem:[#allocation2 + $0x8] sm:$0xf] %v565
    %568 = vrot.lane.b32.xlu0 %v554, 16
    %v569 = vpop.permute.xlu0 %568
    %570 = vrot.lane.b32.xlu0 %v556, 16
    %v571 = vpop.permute.xlu0 %570
    %v572 = vsel %vm99, %v569, %v571
    %v573 = vsel %vm99, %v571, %v569
    %v574 = vmul.f32 %v573, %v105
    %v575 = vmul.f32 %v572, %v109
    %v578 = vrot.slane %v574, 4
    %v579 = vrot.slane %v575, 4
    %582 = vst [vmem:[#allocation2] sm:$0xf0] %v578
    %583 = vst [vmem:[#allocation2 + $0x8] sm:$0xf0] %v579
    %584 = vrot.lane.b32.xlu0 %v554, 15
    %v585 = vpop.permute.xlu0 %584
    %586 = vrot.lane.b32.xlu0 %v556, 15
    %v587 = vpop.permute.xlu0 %586
    %v588 = vsel %vm124, %v585, %v587
    %v589 = vsel %vm124, %v587, %v585
    %v590 = vmul.f32 %v589, %v130
    %v591 = vmul.f32 %v588, %v134
    %592 = vst [vmem:[#allocation2 + $0x10] sm:$0xf] %v590
    %593 = vst [vmem:[#allocation2 + $0x18] sm:$0xf] %v591
    %594 = vrot.lane.b32.xlu0 %v554, 1
    %v595 = vpop.permute.xlu0 %594
    %596 = vrot.lane.b32.xlu0 %v556, 1
    %v597 = vpop.permute.xlu0 %596
    %v598 = vsel %vm143, %v595, %v597
    %v599 = vsel %vm143, %v597, %v595
    %v600 = vmul.f32 %v599, %v149
    %v601 = vmul.f32 %v598, %v153
    %v604 = vrot.slane %v600, 4
    %v605 = vrot.slane %v601, 4
    %608 = vst [vmem:[#allocation2 + $0x10] sm:$0xf0] %v604
    %609 = vst [vmem:[#allocation2 + $0x18] sm:$0xf0] %v605
    %610 = vst [vmem:[#allocation2 + $0x20] sm:$0xf] %v554
    %611 = vst [vmem:[#allocation2 + $0x28] sm:$0xf] %v556
    %612 = vrot.lane.b32.xlu0 %v554, 127
    %v613 = vpop.permute.xlu0 %612
    %614 = vrot.lane.b32.xlu0 %v556, 127
    %v615 = vpop.permute.xlu0 %614
    %v616 = vsel %vm170, %v613, %v615
    %v617 = vsel %vm170, %v615, %v613
    %v618 = vmul.f32 %v616, %v176
    %v619 = vmul.f32 %v617, %v180
    %v622 = vrot.slane %v618, 4
    %v623 = vrot.slane %v619, 4
    %626 = vst [vmem:[#allocation2 + $0x20] sm:$0xf0] %v622
    %627 = vst [vmem:[#allocation2 + $0x28] sm:$0xf0] %v623
    %628 = vrot.lane.b32.xlu0 %v554, 113
    %v629 = vpop.permute.xlu0 %628
    %630 = vrot.lane.b32.xlu0 %v556, 113
    %v631 = vpop.permute.xlu0 %630
    %v632 = vsel %vm195, %v629, %v631
    %v633 = vsel %vm195, %v631, %v629
    %v634 = vmul.f32 %v632, %v201
    %v635 = vmul.f32 %v633, %v205
    %636 = vst [vmem:[#allocation2 + $0x30] sm:$0xf] %v634
    %637 = vst [vmem:[#allocation2 + $0x38] sm:$0xf] %v635
    %638 = vrot.lane.b32.xlu0 %v554, 112
    %v639 = vpop.permute.xlu0 %638
    %640 = vrot.lane.b32.xlu0 %v556, 112
    %v641 = vpop.permute.xlu0 %640
    %v642 = vsel %vm214, %v639, %v641
    %v643 = vsel %vm214, %v641, %v639
    %v644 = vmul.f32 %v642, %v220
    %v645 = vmul.f32 %v643, %v224
    %v648 = vrot.slane %v644, 4
    %v649 = vrot.slane %v645, 4
    %652 = vst [vmem:[#allocation2 + $0x30] sm:$0xf0] %v648
    %653 = vst [vmem:[#allocation2 + $0x38] sm:$0xf0] %v649
    %654 = vrot.lane.b32.xlu0 %v554, 111
    %v655 = vpop.permute.xlu0 %654
    %656 = vrot.lane.b32.xlu0 %v556, 111
    %v657 = vpop.permute.xlu0 %656
    %v658 = vsel %vm239, %v655, %v657
    %v659 = vsel %vm239, %v657, %v655
    %v660 = vmul.f32 %v658, %v245
    %v661 = vmul.f32 %v659, %v249
    %662 = vst [vmem:[#allocation2 + $0x40] sm:$0xf] %v660
    %663 = vst [vmem:[#allocation2 + $0x48] sm:$0xf] %v661
    %v664 = vld [vmem:[#allocation2] sm:$0xff]
    %v665 = vld [vmem:[#allocation2 + $0x8] sm:$0xff]
    %v666 = vld [vmem:[#allocation2 + $0x10] sm:$0xff]
    %v667 = vld [vmem:[#allocation2 + $0x18] sm:$0xff]
    %v668 = vld [vmem:[#allocation2 + $0x20] sm:$0xff]
    %v669 = vld [vmem:[#allocation2 + $0x28] sm:$0xff]
    %v670 = vld [vmem:[#allocation2 + $0x30] sm:$0xff]
    %v671 = vld [vmem:[#allocation2 + $0x38] sm:$0xff]
    %v672 = vld [vmem:[#allocation2 + $0x40] sm:$0xf]
    %v673 = vld [vmem:[#allocation2 + $0x48] sm:$0xf]
    %v675 = vsel %vm268, %v672, 0
    %v678 = vsel %vm268, %v673, 0
    %680 = vmatprep.subr.mxu0 0.0
    %681 = vmatpush1.msra.mxu0 0.0
    %682 = vmatprep.subr.mxu0 0.0
    %683 = vmatpush1.msra.mxu0 0.0
    %684 = vmatprep.subr.mxu0 0.0
    %685 = vmatpush1.msra.mxu0 0.0
    %686 = vmatprep.subr.mxu0 0.0
    %687 = vmatpush1.msra.mxu0 0.0
    %688 = vmatprep.subr.mxu0 0.0
    %689 = vmatpush1.msra.mxu0 0.0
    %690 = vmatprep.subr.mxu0 0.0
    %691 = vmatpush1.msra.mxu0 0.0
    %692 = vmatprep.subr.mxu0 0.0
    %693 = vmatpush1.msra.mxu0 0.0
    %694 = vmatprep.subr.mxu0 0.0
    %695 = vmatpush1.msra.mxu0 0.0
    %696 = vmatprep.subr.mxu0 0.0
    %697 = vmatpush1.msra.mxu0 0.0
    %698 = vmatprep.subr.mxu0 0.0
    %699 = vmatpush1.msra.mxu0 0.0
    %700 = vmatprep.subr.mxu0 0.0
    %701 = vmatpush1.msra.mxu0 0.0
    %702 = vmatprep.subr.mxu0 %v678
    %703 = vmatpush1.msra.mxu0 %v675
    %704 = vmatprep.subr.mxu0 %v671
    %705 = vmatpush1.msra.mxu0 %v670
    %706 = vmatprep.subr.mxu0 %v669
    %707 = vmatpush1.msra.mxu0 %v668
    %708 = vmatprep.subr.mxu0 %v667
    %709 = vmatpush1.msra.mxu0 %v666
    %710 = vmatprep.subr.mxu0 %v665
    %711 = vmatpush1.msra.mxu0 %v664
    %712 = vmatprep.subr.mxu0 0.0
    %713 = vmatpush2.msra.mxu0 0.0
    %714 = vmatprep.subr.mxu0 0.0
    %715 = vmatpush2.msra.mxu0 0.0
    %716 = vmatprep.subr.mxu0 0.0
    %717 = vmatpush2.msra.mxu0 0.0
    %718 = vmatprep.subr.mxu0 0.0
    %719 = vmatpush2.msra.mxu0 0.0
    %720 = vmatprep.subr.mxu0 0.0
    %721 = vmatpush2.msra.mxu0 0.0
    %722 = vmatprep.subr.mxu0 0.0
    %723 = vmatpush2.msra.mxu0 0.0
    %724 = vmatprep.subr.mxu0 0.0
    %725 = vmatpush2.msra.mxu0 0.0
    %726 = vmatprep.subr.mxu0 0.0
    %727 = vmatpush2.msra.mxu0 0.0
    %728 = vmatprep.subr.mxu0 0.0
    %729 = vmatpush2.msra.mxu0 0.0
    %730 = vmatprep.subr.mxu0 0.0
    %731 = vmatpush2.msra.mxu0 0.0
    %732 = vmatprep.subr.mxu0 0.0
    %733 = vmatpush2.msra.mxu0 0.0
    %734 = vmatprep.subr.mxu0 0.0
    %735 = vmatpush2.msra.mxu0 0.0
    %736 = vmatprep.subr.mxu0 0.0
    %737 = vmatpush2.msra.mxu0 0.0
    %738 = vmatprep.subr.mxu0 0.0
    %739 = vmatpush2.msra.mxu0 0.0
    %740 = vmatprep.subr.mxu0 0.0
    %741 = vmatpush2.msra.mxu0 0.0
    %742 = vmatprep.subr.mxu0 0.0
    %743 = vmatpush2.msra.mxu0 0.0
    %744 = vmatprep.mubr.f32.mxu0 0.0
    %745 = vmatmul.mubr.f32.gmra.mxu0 %v266
    %v746 = vpop.f32.mrf.mxu0
    %v747 = vadd.f32 %v62, %v746
    %v748 = vpop.f32.mrf.mxu0
    %v749 = vadd.f32 %v62, %v748
    %750 = vdwg.mxu0
    %v751 = vmax.f32 %v747, 0.0
    %v752 = vmax.f32 %v749, 0.0
    %753 = vrot.lane.b32.xlu0 %v751, 17
    %v754 = vpop.permute.xlu0 %753
    %755 = vrot.lane.b32.xlu0 %v752, 17
    %v756 = vpop.permute.xlu0 %755
    %v757 = vsel %vm80, %v754, %v756
    %v758 = vsel %vm80, %v756, %v754
    %v759 = vmul.f32 %v758, %v86
    %v760 = vmul.f32 %v757, %v90
    %761 = vst [vmem:[#allocation2] sm:$0xf] %v759
    %762 = vst [vmem:[#allocation2 + $0x8] sm:$0xf] %v760
    %763 = vrot.lane.b32.xlu0 %v751, 16
    %v764 = vpop.permute.xlu0 %763
    %765 = vrot.lane.b32.xlu0 %v752, 16
    %v766 = vpop.permute.xlu0 %765
    %v767 = vsel %vm99, %v764, %v766
    %v768 = vsel %vm99, %v766, %v764
    %v769 = vmul.f32 %v768, %v105
    %v770 = vmul.f32 %v767, %v109
    %v773 = vrot.slane %v769, 4
    %v774 = vrot.slane %v770, 4
    %777 = vst [vmem:[#allocation2] sm:$0xf0] %v773
    %778 = vst [vmem:[#allocation2 + $0x8] sm:$0xf0] %v774
    %779 = vrot.lane.b32.xlu0 %v751, 15
    %v780 = vpop.permute.xlu0 %779
    %781 = vrot.lane.b32.xlu0 %v752, 15
    %v782 = vpop.permute.xlu0 %781
    %v783 = vsel %vm124, %v780, %v782
    %v784 = vsel %vm124, %v782, %v780
    %v785 = vmul.f32 %v784, %v130
    %v786 = vmul.f32 %v783, %v134
    %787 = vst [vmem:[#allocation2 + $0x10] sm:$0xf] %v785
    %788 = vst [vmem:[#allocation2 + $0x18] sm:$0xf] %v786
    %789 = vrot.lane.b32.xlu0 %v751, 1
    %v790 = vpop.permute.xlu0 %789
    %791 = vrot.lane.b32.xlu0 %v752, 1
    %v792 = vpop.permute.xlu0 %791
    %v793 = vsel %vm143, %v790, %v792
    %v794 = vsel %vm143, %v792, %v790
    %v795 = vmul.f32 %v794, %v149
    %v796 = vmul.f32 %v793, %v153
    %v799 = vrot.slane %v795, 4
    %v800 = vrot.slane %v796, 4
    %803 = vst [vmem:[#allocation2 + $0x10] sm:$0xf0] %v799
    %804 = vst [vmem:[#allocation2 + $0x18] sm:$0xf0] %v800
    %805 = vst [vmem:[#allocation2 + $0x20] sm:$0xf] %v751
    %806 = vst [vmem:[#allocation2 + $0x28] sm:$0xf] %v752
    %807 = vrot.lane.b32.xlu0 %v751, 127
    %v808 = vpop.permute.xlu0 %807
    %809 = vrot.lane.b32.xlu0 %v752, 127
    %v810 = vpop.permute.xlu0 %809
    %v811 = vsel %vm170, %v808, %v810
    %v812 = vsel %vm170, %v810, %v808
    %v813 = vmul.f32 %v811, %v176
    %v814 = vmul.f32 %v812, %v180
    %v817 = vrot.slane %v813, 4
    %v818 = vrot.slane %v814, 4
    %821 = vst [vmem:[#allocation2 + $0x20] sm:$0xf0] %v817
    %822 = vst [vmem:[#allocation2 + $0x28] sm:$0xf0] %v818
    %823 = vrot.lane.b32.xlu0 %v751, 113
    %v824 = vpop.permute.xlu0 %823
    %825 = vrot.lane.b32.xlu0 %v752, 113
    %v826 = vpop.permute.xlu0 %825
    %v827 = vsel %vm195, %v824, %v826
    %v828 = vsel %vm195, %v826, %v824
    %v829 = vmul.f32 %v827, %v201
    %v830 = vmul.f32 %v828, %v205
    %831 = vst [vmem:[#allocation2 + $0x30] sm:$0xf] %v829
    %832 = vst [vmem:[#allocation2 + $0x38] sm:$0xf] %v830
    %833 = vrot.lane.b32.xlu0 %v751, 112
    %v834 = vpop.permute.xlu0 %833
    %835 = vrot.lane.b32.xlu0 %v752, 112
    %v836 = vpop.permute.xlu0 %835
    %v837 = vsel %vm214, %v834, %v836
    %v838 = vsel %vm214, %v836, %v834
    %v839 = vmul.f32 %v837, %v220
    %v840 = vmul.f32 %v838, %v224
    %v843 = vrot.slane %v839, 4
    %v844 = vrot.slane %v840, 4
    %847 = vst [vmem:[#allocation2 + $0x30] sm:$0xf0] %v843
    %848 = vst [vmem:[#allocation2 + $0x38] sm:$0xf0] %v844
    %849 = vrot.lane.b32.xlu0 %v751, 111
    %v850 = vpop.permute.xlu0 %849
    %851 = vrot.lane.b32.xlu0 %v752, 111
    %v852 = vpop.permute.xlu0 %851
    %v853 = vsel %vm239, %v850, %v852
    %v854 = vsel %vm239, %v852, %v850
    %v855 = vmul.f32 %v853, %v245
    %v856 = vmul.f32 %v854, %v249
    %857 = vst [vmem:[#allocation2 + $0x40] sm:$0xf] %v855
    %858 = vst [vmem:[#allocation2 + $0x48] sm:$0xf] %v856
    %v859 = vld [vmem:[#allocation2] sm:$0xff]
    %v860 = vld [vmem:[#allocation2 + $0x8] sm:$0xff]
    %v861 = vld [vmem:[#allocation2 + $0x10] sm:$0xff]
    %v862 = vld [vmem:[#allocation2 + $0x18] sm:$0xff]
    %v863 = vld [vmem:[#allocation2 + $0x20] sm:$0xff]
    %v864 = vld [vmem:[#allocation2 + $0x28] sm:$0xff]
    %v865 = vld [vmem:[#allocation2 + $0x30] sm:$0xff]
    %v866 = vld [vmem:[#allocation2 + $0x38] sm:$0xff]
    %v867 = vld [vmem:[#allocation2 + $0x40] sm:$0xf]
    %v868 = vld [vmem:[#allocation2 + $0x48] sm:$0xf]
    %v870 = vsel %vm268, %v867, 0
    %v873 = vsel %vm268, %v868, 0
    %875 = vmatprep.subr.mxu0 0.0
    %876 = vmatpush1.msra.mxu0 0.0
    %877 = vmatprep.subr.mxu0 0.0
    %878 = vmatpush1.msra.mxu0 0.0
    %879 = vmatprep.subr.mxu0 0.0
    %880 = vmatpush1.msra.mxu0 0.0
    %881 = vmatprep.subr.mxu0 0.0
    %882 = vmatpush1.msra.mxu0 0.0
    %883 = vmatprep.subr.mxu0 0.0
    %884 = vmatpush1.msra.mxu0 0.0
    %885 = vmatprep.subr.mxu0 0.0
    %886 = vmatpush1.msra.mxu0 0.0
    %887 = vmatprep.subr.mxu0 0.0
    %888 = vmatpush1.msra.mxu0 0.0
    %889 = vmatprep.subr.mxu0 0.0
    %890 = vmatpush1.msra.mxu0 0.0
    %891 = vmatprep.subr.mxu0 0.0
    %892 = vmatpush1.msra.mxu0 0.0
    %893 = vmatprep.subr.mxu0 0.0
    %894 = vmatpush1.msra.mxu0 0.0
    %895 = vmatprep.subr.mxu0 0.0
    %896 = vmatpush1.msra.mxu0 0.0
    %897 = vmatprep.subr.mxu0 %v873
    %898 = vmatpush1.msra.mxu0 %v870
    %899 = vmatprep.subr.mxu0 %v866
    %900 = vmatpush1.msra.mxu0 %v865
    %901 = vmatprep.subr.mxu0 %v864
    %902 = vmatpush1.msra.mxu0 %v863
    %903 = vmatprep.subr.mxu0 %v862
    %904 = vmatpush1.msra.mxu0 %v861
    %905 = vmatprep.subr.mxu0 %v860
    %906 = vmatpush1.msra.mxu0 %v859
    %907 = vmatprep.subr.mxu0 0.0
    %908 = vmatpush2.msra.mxu0 0.0
    %909 = vmatprep.subr.mxu0 0.0
    %910 = vmatpush2.msra.mxu0 0.0
    %911 = vmatprep.subr.mxu0 0.0
    %912 = vmatpush2.msra.mxu0 0.0
    %913 = vmatprep.subr.mxu0 0.0
    %914 = vmatpush2.msra.mxu0 0.0
    %915 = vmatprep.subr.mxu0 0.0
    %916 = vmatpush2.msra.mxu0 0.0
    %917 = vmatprep.subr.mxu0 0.0
    %918 = vmatpush2.msra.mxu0 0.0
    %919 = vmatprep.subr.mxu0 0.0
    %920 = vmatpush2.msra.mxu0 0.0
    %921 = vmatprep.subr.mxu0 0.0
    %922 = vmatpush2.msra.mxu0 0.0
    %923 = vmatprep.subr.mxu0 0.0
    %924 = vmatpush2.msra.mxu0 0.0
    %925 = vmatprep.subr.mxu0 0.0
    %926 = vmatpush2.msra.mxu0 0.0
    %927 = vmatprep.subr.mxu0 0.0
    %928 = vmatpush2.msra.mxu0 0.0
    %929 = vmatprep.subr.mxu0 0.0
    %930 = vmatpush2.msra.mxu0 0.0
    %931 = vmatprep.subr.mxu0 0.0
    %932 = vmatpush2.msra.mxu0 0.0
    %933 = vmatprep.subr.mxu0 0.0
    %934 = vmatpush2.msra.mxu0 0.0
    %935 = vmatprep.subr.mxu0 0.0
    %936 = vmatpush2.msra.mxu0 0.0
    %937 = vmatprep.subr.mxu0 0.0
    %938 = vmatpush2.msra.mxu0 0.0
    %939 = vmatprep.mubr.f32.mxu0 0.0
    %940 = vmatmul.mubr.f32.gmra.mxu0 %v465
    %v941 = vpop.f32.mrf.mxu0
    %v942 = vadd.f32 %v68, %v941
    %v943 = vpop.f32.mrf.mxu0
    %v944 = vadd.f32 %v68, %v943
    %945 = vdwg.mxu0
    %v946 = vadd.f32 %v942, %v554
    %v947 = vadd.f32 %v944, %v556
    %v948 = vmax.f32 %v946, 0.0
    %v949 = vmax.f32 %v947, 0.0
    %v952 = vcombine.low %v948, %v949
    %s954 = scalar_lea.vmem [#allocation8], 8
    %955 = vst [vmem:[%s954] sm:$0xff] %v952
    // Predicated region
    $region34: #{tpu_custom_call.1} parent=1 // pred_check
      _
    $region35: #{tpu_custom_call.1} parent=1 // pred_check_branch
      %957 = sbr.rel (0) target = $region37
    $region36: #{tpu_custom_call.1} parent=1 // pred_region
      %s959 = ssub.s32 256, 256
      %960 = vsyncadd [#allocation5], %s959
      %s961 = sshll.u32 [#allocation8], 4
      %s962 = int_to_ptr.vmem [resolvable:$true] %s961
      %967 = dma.vmem_to_hbm [thread:$0]  %s962, 256, %s6, [#allocation5], 128, 128, 8
    $region37: #{tpu_custom_call.1} parent=1 // pred_fallthru
      _
    // Predicated region
    $region38: #{tpu_custom_call.1} parent=1 // pred_check
      _
    $region39: #{tpu_custom_call.1} parent=1 // pred_check_branch
      %969 = sbr.rel (0) target = $region41
    $region40: #{tpu_custom_call.1} parent=1 // pred_region
      %970 = dma.done [#allocation5], 256
    $region41: #{tpu_custom_call.1} parent=1 // pred_fallthru
      _
    %971 = vsyncpa [#allocation4], 1
    %972 = vsyncpa [#allocation7], 1
    %973 = vsyncpa [#allocation5], 1

</llo_original>
